<compile_context>
chip_gen: v7x
topology: tpu7x:2x2x1
jax: 0.10.0
libtpu: 0.0.40
codegen_flags: <defaults>
</compile_context>

<pallas_src>
import functools

import jax
import jax.numpy as jnp
from jax.experimental import pallas as pl
from jax.experimental.pallas import tpu as pltpu

_EPS = 1e-5


def _round_up(x, m):
    return ((x + m - 1) // m) * m


def _pick_tile_m(M):
    # Prefer 256 so the toy shapes still exercise the multi-tile + two-phase
    # path.  At real ResNet sizes pick 512-1024 rows (v5e/v6e, 128 MiB VMEM)
    # or roughly half that on v7x (64 MiB VMEM).
    for t in (256, 512, 128):
        if M % t == 0:
            return t
    return M


# ------------------------------ Pallas kernel --------------------------------
def _fused_conv_bn_kernel(*refs, m_total, eps, do_relu, shortcut):
    """Fused im2col-GEMM + BatchNorm(batch stats) [+ shortcut] [+ ReLU].

    Grid = (2, num_m_tiles).  Axis 0 is the phase:
      phase 0: accumulate per-channel sum / sum-of-squares over all M tiles
               into VMEM scratch.
      phase 1: recompute the GEMM tile, normalize, add shortcut, ReLU, store.
    """
    if shortcut == "proj":
        (wm, gm, bm, ws, gs, bs, pm, ps, o_ref,
         sum_m, ssq_m, sum_s, ssq_s) = refs
    elif shortcut == "identity":
        (wm, gm, bm, pm, res, o_ref, sum_m, ssq_m) = refs
    else:
        (wm, gm, bm, pm, o_ref, sum_m, ssq_m) = refs

    phase = pl.program_id(0)
    m_idx = pl.program_id(1)

    # bf16 x bf16 -> f32 accumulation on the MXU, output (Cout, tile_M).
    acc_m = jnp.dot(wm[...], pm[...], preferred_element_type=jnp.float32)
    if shortcut == "proj":
        acc_s = jnp.dot(ws[...], ps[...], preferred_element_type=jnp.float32)

    @pl.when((phase == 0) & (m_idx == 0))
    def _init():
        sum_m[...] = jnp.zeros_like(sum_m)
        ssq_m[...] = jnp.zeros_like(ssq_m)
        if shortcut == "proj":
            sum_s[...] = jnp.zeros_like(sum_s)
            ssq_s[...] = jnp.zeros_like(ssq_s)

    @pl.when(phase == 0)
    def _accumulate():
        sum_m[...] += jnp.sum(acc_m, axis=1, keepdims=True)
        ssq_m[...] += jnp.sum(acc_m * acc_m, axis=1, keepdims=True)
        if shortcut == "proj":
            sum_s[...] += jnp.sum(acc_s, axis=1, keepdims=True)
            ssq_s[...] += jnp.sum(acc_s * acc_s, axis=1, keepdims=True)

    @pl.when(phase == 1)
    def _finalize():
        inv_m = 1.0 / m_total

        def bn(acc, s_ref, q_ref, g_ref, b_ref):
            mean = s_ref[...] * inv_m
            var = q_ref[...] * inv_m - mean * mean   # single-pass E[x^2]-mean^2
            return (acc - mean) * jax.lax.rsqrt(var + eps) * g_ref[...] + b_ref[...]

        out = bn(acc_m, sum_m, ssq_m, gm, bm)
        if shortcut == "proj":
            out = out + bn(acc_s, sum_s, ssq_s, gs, bs)
        elif shortcut == "identity":
            out = out + res[...]
        if do_relu:
            out = jnp.maximum(out, 0.0)
        o_ref[...] = out.astype(o_ref.dtype)


def fused_conv_bn(w, g, b, patches, *, relu, shortcut="none",
                  ws=None, gs=None, bs=None, s_patches=None, residual=None):
    """out[Cout, M] = ReLU?(BN(W @ patches) [+ shortcut]).  patches: (K, M) bf16."""
    Cout, Km = w.shape
    K_p, M = patches.shape
    assert K_p == Km, (K_p, Km)
    tm = _pick_tile_m(M)
    num_m = M // tm

    def resident(shape):
        return pl.BlockSpec(shape, lambda ph, m: (0, 0))

    def tiled(rows):
        return pl.BlockSpec((rows, tm), lambda ph, m: (0, m))

    inputs = [w, g, b]
    in_specs = [resident((Cout, Km)), resident((Cout, 1)), resident((Cout, 1))]
    scratch = [pltpu.VMEM((Cout, 1), jnp.float32),
               pltpu.VMEM((Cout, 1), jnp.float32)]
    flops = 2 * 2 * M * Km * Cout                    # GEMM runs in both phases
    bytes_accessed = 2 * patches.size * 2 + w.size * 2 + Cout * M * 4

    if shortcut == "proj":
        Ks = ws.shape[1]
        inputs += [ws, gs, bs]
        in_specs += [resident((Cout, Ks)), resident((Cout, 1)), resident((Cout, 1))]
        scratch += [pltpu.VMEM((Cout, 1), jnp.float32),
                    pltpu.VMEM((Cout, 1), jnp.float32)]
        flops += 2 * 2 * M * Ks * Cout
        bytes_accessed += 2 * s_patches.size * 2 + ws.size * 2

    inputs.append(patches)
    in_specs.append(tiled(Km))
    if shortcut == "proj":
        inputs.append(s_patches)
        in_specs.append(tiled(Ks))
    elif shortcut == "identity":
        inputs.append(residual)
        in_specs.append(tiled(Cout))
        bytes_accessed += residual.size * 4

    # Phase 0 parks the output on block 0 (nothing stored); phase 1 walks the
    # M tiles and writes each lane-dense (Cout, tm) block exactly once.
    out_spec = pl.BlockSpec((Cout, tm), lambda ph, m: (0, m * ph))

    kernel = functools.partial(_fused_conv_bn_kernel, m_total=float(M),
                               eps=_EPS, do_relu=relu, shortcut=shortcut)

    return pl.pallas_call(
        kernel,
        out_shape=jax.ShapeDtypeStruct((Cout, M), jnp.float32),
        grid=(2, num_m),
        in_specs=in_specs,
        out_specs=out_spec,
        scratch_shapes=scratch,
        compiler_params=pltpu.CompilerParams(
            # BN stats accumulate across M tiles -> both grid axes are serial.
            dimension_semantics=("arbitrary", "arbitrary"),
            vmem_limit_bytes=32 * 1024 * 1024),
        cost_estimate=pl.CostEstimate(flops=int(flops), transcendentals=0,
                                      bytes_accessed=int(bytes_accessed)),
    )(*inputs)


# -------------------------------- JAX glue -----------------------------------
def _im2col_t(x_nhwc, k, stride, pad):
    """(N,H,W,C) -> patches (k*k*C, N*Ho*Wo), K ordered (kh, kw, c)."""
    N, H, W, C = x_nhwc.shape
    xp = jnp.pad(x_nhwc, ((0, 0), (pad, pad), (pad, pad), (0, 0)))
    Ho = (H + 2 * pad - k) // stride + 1
    Wo = (W + 2 * pad - k) // stride + 1
    cols = []
    for kh in range(k):
        for kw in range(k):
            cols.append(
                xp[:, kh:kh + stride * Ho:stride, kw:kw + stride * Wo:stride, :])
    patches = jnp.concatenate(cols, axis=-1)           # (N, Ho, Wo, k*k*C)
    # TODO(synk): build patches in-kernel from a haloed VMEM tile to kill the
    # k*k HBM amplification at real ResNet sizes; here it stays fused in jit.
    return patches.reshape(N * Ho * Wo, k * k * C).T, Ho, Wo


def _pad_k(p, k_target):
    k = p.shape[0]
    if k == k_target:
        return p
    return jnp.pad(p, ((0, k_target - k), (0, 0)))


def prepare_params(params):
    """One-time prep: GEMM-ready bf16 weights (Cout, K_padded_to_8) and
    (Cout, 1) f32 gamma/beta columns."""
    def wmat(w):
        Cout, Cin, kh, kw = w.shape
        K = kh * kw * Cin
        m = jnp.transpose(w, (0, 2, 3, 1)).reshape(Cout, K)   # K order (kh,kw,c)
        m = jnp.pad(m, ((0, 0), (0, _round_up(K, 8) - K)))
        return m.astype(jnp.bfloat16)

    def col(v):
        return v.reshape(-1, 1).astype(jnp.float32)

    prep = {"w1": wmat(params["w1"]), "g1": col(params["g1"]), "b1": col(params["b1"]),
            "w2": wmat(params["w2"]), "g2": col(params["g2"]), "b2": col(params["b2"])}
    if "ws" in params:
        prep["ws"] = wmat(params["ws"])
        prep["gs"] = col(params["gs"])
        prep["bs"] = col(params["bs"])
    return prep


def basic_block_forward(x_nchw, prep, stride=1):
    """BasicBlock forward (training-mode BN). NCHW -> NCHW, two pallas_calls."""
    N, Cin, H, W = x_nchw.shape
    Cout = prep["w1"].shape[0]
    x_nhwc = jnp.transpose(x_nchw, (0, 2, 3, 1))

    # conv1(3x3, stride, pad 1) + bn1 + relu  -> (Cout, M) channel-major slab
    p1, Ho, Wo = _im2col_t(x_nhwc, 3, stride, 1)
    p1 = _pad_k(p1, prep["w1"].shape[1]).astype(jnp.bfloat16)
    out1 = fused_conv_bn(prep["w1"], prep["g1"], prep["b1"], p1, relu=True)

    # conv2(3x3, 1, pad 1) + bn2 + shortcut + add + relu, fused in one kernel
    out1_nhwc = jnp.transpose(out1.reshape(Cout, N, Ho, Wo), (1, 2, 3, 0))
    p2, _, _ = _im2col_t(out1_nhwc, 3, 1, 1)
    p2 = _pad_k(p2, prep["w2"].shape[1]).astype(jnp.bfloat16)

    if stride != 1 or Cin != Cout:
        ps, _, _ = _im2col_t(x_nhwc, 1, stride, 0)
        ps = _pad_k(ps, prep["ws"].shape[1]).astype(jnp.bfloat16)
        out2 = fused_conv_bn(prep["w2"], prep["g2"], prep["b2"], p2, relu=True,
                             shortcut="proj", ws=prep["ws"], gs=prep["gs"],
                             bs=prep["bs"], s_patches=ps)
    else:
        res = jnp.reshape(jnp.transpose(x_nchw, (1, 0, 2, 3)), (Cout, N * H * W))
        out2 = fused_conv_bn(prep["w2"], prep["g2"], prep["b2"], p2, relu=True,
                             shortcut="identity", residual=res.astype(jnp.float32))

    # (Cout, N*Ho*Wo) is already channel-major: reshape straight to NCHW.
    return jnp.transpose(out2.reshape(Cout, N, Ho, Wo), (1, 0, 2, 3))


# ----------------------------- pure-JAX reference ----------------------------
def _ref_conv(x_nhwc, w_oihw, stride, pad, cast_bf16):
    w = jnp.transpose(w_oihw, (2, 3, 1, 0))
    if cast_bf16:
        x_nhwc = x_nhwc.astype(jnp.bfloat16)
        w = w.astype(jnp.bfloat16)
    return jax.lax.conv_general_dilated(
        x_nhwc, w, (stride, stride), [(pad, pad), (pad, pad)],
        dimension_numbers=("NHWC", "HWIO", "NHWC"),
        preferred_element_type=jnp.float32)


def _ref_bn(y, g, b):
    mean = y.mean(axis=(0, 1, 2), keepdims=True)
    var = jnp.square(y - mean).mean(axis=(0, 1, 2), keepdims=True)
    return (y - mean) * jax.lax.rsqrt(var + _EPS) * g + b


def _ref_block(x_nchw, params, stride=1, cast_bf16=True):
    x = jnp.transpose(x_nchw, (0, 2, 3, 1))
    Cin = x.shape[-1]
    Cout = params["w1"].shape[0]
    out = jax.nn.relu(_ref_bn(_ref_conv(x, params["w1"], stride, 1, cast_bf16),
                              params["g1"], params["b1"]))
    out = _ref_bn(_ref_conv(out, params["w2"], 1, 1, cast_bf16),
                  params["g2"], params["b2"])
    if stride != 1 or Cin != Cout:
        sc = _ref_bn(_ref_conv(x, params["ws"], stride, 0, cast_bf16),
                     params["gs"], params["bs"])
    else:
        sc = x
    out = jax.nn.relu(out + sc)
    return jnp.transpose(out, (0, 3, 1, 2))


# ----------------------------------- main -------------------------------------
if __name__ == "__main__":
    key = jax.random.PRNGKey(0)

    def make_params(k, Cin, Cout, need_proj):
        ks = jax.random.split(k, 9)
        p = {
            "w1": 0.1 * jax.random.normal(ks[0], (Cout, Cin, 3, 3), jnp.float32),
            "g1": 1.0 + 0.1 * jax.random.normal(ks[1], (Cout,), jnp.float32),
            "b1": 0.1 * jax.random.normal(ks[2], (Cout,), jnp.float32),
            "w2": 0.1 * jax.random.normal(ks[3], (Cout, Cout, 3, 3), jnp.float32),
            "g2": 1.0 + 0.1 * jax.random.normal(ks[4], (Cout,), jnp.float32),
            "b2": 0.1 * jax.random.normal(ks[5], (Cout,), jnp.float32),
        }
        if need_proj:
            p["ws"] = 0.1 * jax.random.normal(ks[6], (Cout, Cin, 1, 1), jnp.float32)
            p["gs"] = 1.0 + 0.1 * jax.random.normal(ks[7], (Cout,), jnp.float32)
            p["bs"] = 0.1 * jax.random.normal(ks[8], (Cout,), jnp.float32)
        return p

    configs = [  # (name, N, Cin, H, W, Cout, stride)
        ("proj_stride1", 2, 4, 16, 16, 8, 1),
        ("proj_stride2", 2, 4, 16, 16, 8, 2),
        ("identity", 2, 8, 16, 16, 8, 1),
    ]

    for name, N, Cin, H, W, Cout, stride in configs:
        key, k_p, k_x = jax.random.split(key, 3)
        need_proj = (stride != 1) or (Cin != Cout)
        params = make_params(k_p, Cin, Cout, need_proj)
        x = jax.random.normal(k_x, (N, Cin, H, W), jnp.float32)

        prep = prepare_params(params)        # one-time weight prep (bf16, K pad)
        fwd = jax.jit(functools.partial(basic_block_forward, stride=stride))
        out = jax.block_until_ready(fwd(x, prep))

        ref_bf16 = jax.block_until_ready(_ref_block(x, params, stride, cast_bf16=True))
        ref_f32 = jax.block_until_ready(_ref_block(x, params, stride, cast_bf16=False))

        Ho = (H + 2 - 3) // stride + 1
        Wo = (W + 2 - 3) // stride + 1
        assert out.shape == (N, Cout, Ho, Wo), (name, out.shape)

        err_bf = float(jnp.max(jnp.abs(out - ref_bf16)))
        err_f32 = float(jnp.max(jnp.abs(out - ref_f32)))
        assert err_bf < 5e-2, (name, "bf16-matched ref max err", err_bf)
        assert err_f32 < 0.25, (name, "f32 ref max err", err_f32)

    print("KERNEL_OK")
</pallas_src>

<mosaic_0001>
module attributes {stable_mosaic.version = 11 : i64} {
  func.func @_fused_conv_bn_kernel(%arg0: i32, %arg1: i32, %arg2: memref<8x40xbf16, #tpu.memory_space<vmem>>, %arg3: memref<8x1xf32, #tpu.memory_space<vmem>>, %arg4: memref<8x1xf32, #tpu.memory_space<vmem>>, %arg5: memref<40x256xbf16, #tpu.memory_space<vmem>>, %arg6: memref<8x256xf32, #tpu.memory_space<vmem>>, %arg7: memref<8x1xf32, #tpu.memory_space<vmem>>, %arg8: memref<8x1xf32, #tpu.memory_space<vmem>>) attributes {dimension_semantics = [#tpu.dimension_semantics<arbitrary>, #tpu.dimension_semantics<arbitrary>], iteration_bounds = array<i64: 2, 2>, scalar_prefetch = 0 : i64, scratch_operands = 2 : i64, tpu.core_type = #tpu.core_type<tc>, window_params = [{pipeline_mode = #tpu.pipeline_mode<synchronous>, transform_indices = @transform_0, window_bounds = array<i64: 8, 40>}, {pipeline_mode = #tpu.pipeline_mode<synchronous>, transform_indices = @transform_1, window_bounds = array<i64: 8, 1>}, {pipeline_mode = #tpu.pipeline_mode<synchronous>, transform_indices = @transform_2, window_bounds = array<i64: 8, 1>}, {transform_indices = @transform_3, window_bounds = array<i64: 40, 256>}, {transform_indices = @transform_4, window_bounds = array<i64: 8, 256>}]} {
    %c0 = arith.constant 0 : index
    %c0_0 = arith.constant 0 : index
    %0 = vector.load %arg2[%c0, %c0_0] : memref<8x40xbf16, #tpu.memory_space<vmem>>, vector<8x40xbf16>
    %c0_1 = arith.constant 0 : index
    %c0_2 = arith.constant 0 : index
    %1 = vector.load %arg5[%c0_1, %c0_2] : memref<40x256xbf16, #tpu.memory_space<vmem>>, vector<40x256xbf16>
    %cst = arith.constant dense<0.000000e+00> : vector<8x256xf32>
    %2 = tpu.matmul %0, %1, %cst {dimension_numbers = #tpu.dot_dimension_numbers<[1], [0], [0], [1], [0, 0, 1, 1], [], []>} : vector<8x40xbf16>, vector<40x256xbf16>, vector<8x256xf32> -> vector<8x256xf32>
    %c0_i32 = arith.constant 0 : i32
    %3 = arith.cmpi eq, %arg0, %c0_i32 : i32
    %c0_i32_3 = arith.constant 0 : i32
    %4 = arith.cmpi eq, %arg1, %c0_i32_3 : i32
    %5 = arith.andi %3, %4 : i1
    %6 = arith.extui %5 : i1 to i32
    %c0_i32_4 = arith.constant 0 : i32
    %7 = arith.cmpi ne, %6, %c0_i32_4 : i32
    scf.if %7 {
      %cst_8 = arith.constant 0.000000e+00 : f32
      %14 = vector.broadcast %cst_8 : f32 to vector<8x1xf32>
      %c0_9 = arith.constant 0 : index
      %c0_10 = arith.constant 0 : index
      %15 = vector.load %arg7[%c0_9, %c0_10] : memref<8x1xf32, #tpu.memory_space<vmem>>, vector<8x1xf32>
      tpu.vector_store %arg7[%c0_9, %c0_10], %14 {strides = array<i32>} : memref<8x1xf32, #tpu.memory_space<vmem>>, vector<8x1xf32>,
      %cst_11 = arith.constant 0.000000e+00 : f32
      %16 = vector.broadcast %cst_11 : f32 to vector<8x1xf32>
      %c0_12 = arith.constant 0 : index
      %c0_13 = arith.constant 0 : index
      %17 = vector.load %arg8[%c0_12, %c0_13] : memref<8x1xf32, #tpu.memory_space<vmem>>, vector<8x1xf32>
      tpu.vector_store %arg8[%c0_12, %c0_13], %16 {strides = array<i32>} : memref<8x1xf32, #tpu.memory_space<vmem>>, vector<8x1xf32>,
    } else {
    }
    %c0_i32_5 = arith.constant 0 : i32
    %8 = arith.cmpi eq, %arg0, %c0_i32_5 : i32
    %9 = arith.extui %8 : i1 to i32
    %c0_i32_6 = arith.constant 0 : i32
    %10 = arith.cmpi ne, %9, %c0_i32_6 : i32
    scf.if %10 {
      %c0_8 = arith.constant 0 : index
      %c0_9 = arith.constant 0 : index
      %14 = vector.load %arg7[%c0_8, %c0_9] : memref<8x1xf32, #tpu.memory_space<vmem>>, vector<8x1xf32>
      %cst_10 = arith.constant dense<0.000000e+00> : vector<8xf32>
      %15 = vector.multi_reduction <add>, %2, %cst_10 [1] : vector<8x256xf32> to vector<8xf32>
      %16 = vector.shape_cast %15 : vector<8xf32> to vector<8x1xf32>
      %17 = arith.addf %14, %16 : vector<8x1xf32>
      %c0_11 = arith.constant 0 : index
      %c0_12 = arith.constant 0 : index
      %18 = vector.load %arg7[%c0_11, %c0_12] : memref<8x1xf32, #tpu.memory_space<vmem>>, vector<8x1xf32>
      tpu.vector_store %arg7[%c0_11, %c0_12], %17 {strides = array<i32>} : memref<8x1xf32, #tpu.memory_space<vmem>>, vector<8x1xf32>,
      %c0_13 = arith.constant 0 : index
      %c0_14 = arith.constant 0 : index
      %19 = vector.load %arg8[%c0_13, %c0_14] : memref<8x1xf32, #tpu.memory_space<vmem>>, vector<8x1xf32>
      %20 = arith.mulf %2, %2 : vector<8x256xf32>
      %cst_15 = arith.constant dense<0.000000e+00> : vector<8xf32>
      %21 = vector.multi_reduction <add>, %20, %cst_15 [1] : vector<8x256xf32> to vector<8xf32>
      %22 = vector.shape_cast %21 : vector<8xf32> to vector<8x1xf32>
      %23 = arith.addf %19, %22 : vector<8x1xf32>
      %c0_16 = arith.constant 0 : index
      %c0_17 = arith.constant 0 : index
      %24 = vector.load %arg8[%c0_16, %c0_17] : memref<8x1xf32, #tpu.memory_space<vmem>>, vector<8x1xf32>
      tpu.vector_store %arg8[%c0_16, %c0_17], %23 {strides = array<i32>} : memref<8x1xf32, #tpu.memory_space<vmem>>, vector<8x1xf32>,
    } else {
    }
    %c1_i32 = arith.constant 1 : i32
    %11 = arith.cmpi eq, %arg0, %c1_i32 : i32
    %12 = arith.extui %11 : i1 to i32
    %c0_i32_7 = arith.constant 0 : i32
    %13 = arith.cmpi ne, %12, %c0_i32_7 : i32
    scf.if %13 {
      %c0_8 = arith.constant 0 : index
      %c0_9 = arith.constant 0 : index
      %14 = vector.load %arg7[%c0_8, %c0_9] : memref<8x1xf32, #tpu.memory_space<vmem>>, vector<8x1xf32>
      %cst_10 = arith.constant 0.001953125 : f32
      %15 = vector.broadcast %cst_10 : f32 to vector<8x1xf32>
      %16 = arith.mulf %14, %15 : vector<8x1xf32>
      %c0_11 = arith.constant 0 : index
      %c0_12 = arith.constant 0 : index
      %17 = vector.load %arg8[%c0_11, %c0_12] : memref<8x1xf32, #tpu.memory_space<vmem>>, vector<8x1xf32>
      %cst_13 = arith.constant 0.001953125 : f32
      %18 = vector.broadcast %cst_13 : f32 to vector<8x1xf32>
      %19 = arith.mulf %17, %18 : vector<8x1xf32>
      %20 = arith.mulf %16, %16 : vector<8x1xf32>
      %21 = arith.subf %19, %20 : vector<8x1xf32>
      %22 = vector.broadcast %16 : vector<8x1xf32> to vector<8x256xf32>
      %23 = arith.subf %2, %22 : vector<8x256xf32>
      %cst_14 = arith.constant 9.99999974E-6 : f32
      %24 = vector.broadcast %cst_14 : f32 to vector<8x1xf32>
      %25 = arith.addf %21, %24 : vector<8x1xf32>
      %26 = math.rsqrt %25 : vector<8x1xf32>
      %27 = vector.broadcast %26 : vector<8x1xf32> to vector<8x256xf32>
      %28 = arith.mulf %23, %27 : vector<8x256xf32>
      %c0_15 = arith.constant 0 : index
      %c0_16 = arith.constant 0 : index
      %29 = vector.load %arg3[%c0_15, %c0_16] : memref<8x1xf32, #tpu.memory_space<vmem>>, vector<8x1xf32>
      %30 = vector.broadcast %29 : vector<8x1xf32> to vector<8x256xf32>
      %31 = arith.mulf %28, %30 : vector<8x256xf32>
      %c0_17 = arith.constant 0 : index
      %c0_18 = arith.constant 0 : index
      %32 = vector.load %arg4[%c0_17, %c0_18] : memref<8x1xf32, #tpu.memory_space<vmem>>, vector<8x1xf32>
      %33 = vector.broadcast %32 : vector<8x1xf32> to vector<8x256xf32>
      %34 = arith.addf %31, %33 : vector<8x256xf32>
      %cst_19 = arith.constant 0.000000e+00 : f32
      %35 = vector.broadcast %cst_19 : f32 to vector<8x256xf32>
      %36 = arith.maximumf %34, %35 : vector<8x256xf32>
      %c0_20 = arith.constant 0 : index
      %c0_21 = arith.constant 0 : index
      %37 = vector.load %arg6[%c0_20, %c0_21] : memref<8x256xf32, #tpu.memory_space<vmem>>, vector<8x256xf32>
      tpu.vector_store %arg6[%c0_20, %c0_21], %36 {strides = array<i32>} : memref<8x256xf32, #tpu.memory_space<vmem>>, vector<8x256xf32>,
    } else {
    }
    return
  }
  func.func @transform_0(%arg0: i32, %arg1: i32) -> (i32, i32) {
    %c0_i32 = arith.constant 0 : i32
    %c0_i32_0 = arith.constant 0 : i32
    %c0_i32_1 = arith.constant 0 : i32
    return %c0_i32, %c0_i32_0 : i32, i32
  }
  func.func @transform_1(%arg0: i32, %arg1: i32) -> (i32, i32) {
    %c0_i32 = arith.constant 0 : i32
    %c0_i32_0 = arith.constant 0 : i32
    %c0_i32_1 = arith.constant 0 : i32
    return %c0_i32, %c0_i32_0 : i32, i32
  }
  func.func @transform_2(%arg0: i32, %arg1: i32) -> (i32, i32) {
    %c0_i32 = arith.constant 0 : i32
    %c0_i32_0 = arith.constant 0 : i32
    %c0_i32_1 = arith.constant 0 : i32
    return %c0_i32, %c0_i32_0 : i32, i32
  }
  func.func @transform_3(%arg0: i32, %arg1: i32) -> (i32, i32) {
    %c0_i32 = arith.constant 0 : i32
    %c0_i32_0 = arith.constant 0 : i32
    return %c0_i32, %arg1 : i32, i32
  }
  func.func @transform_4(%arg0: i32, %arg1: i32) -> (i32, i32) {
    %0 = arith.muli %arg1, %arg0 : i32
    %c0_i32 = arith.constant 0 : i32
    %c0_i32_0 = arith.constant 0 : i32
    return %c0_i32, %0 : i32, i32
  }
}

module attributes {stable_mosaic.version = 11 : i64} {
  func.func @_fused_conv_bn_kernel(%arg0: i32, %arg1: i32, %arg2: memref<8x72xbf16, #tpu.memory_space<vmem>>, %arg3: memref<8x1xf32, #tpu.memory_space<vmem>>, %arg4: memref<8x1xf32, #tpu.memory_space<vmem>>, %arg5: memref<8x8xbf16, #tpu.memory_space<vmem>>, %arg6: memref<8x1xf32, #tpu.memory_space<vmem>>, %arg7: memref<8x1xf32, #tpu.memory_space<vmem>>, %arg8: memref<72x256xbf16, #tpu.memory_space<vmem>>, %arg9: memref<8x256xbf16, #tpu.memory_space<vmem>>, %arg10: memref<8x256xf32, #tpu.memory_space<vmem>>, %arg11: memref<8x1xf32, #tpu.memory_space<vmem>>, %arg12: memref<8x1xf32, #tpu.memory_space<vmem>>, %arg13: memref<8x1xf32, #tpu.memory_space<vmem>>, %arg14: memref<8x1xf32, #tpu.memory_space<vmem>>) attributes {dimension_semantics = [#tpu.dimension_semantics<arbitrary>, #tpu.dimension_semantics<arbitrary>], iteration_bounds = array<i64: 2, 2>, scalar_prefetch = 0 : i64, scratch_operands = 4 : i64, tpu.core_type = #tpu.core_type<tc>, window_params = [{pipeline_mode = #tpu.pipeline_mode<synchronous>, transform_indices = @transform_0, window_bounds = array<i64: 8, 72>}, {pipeline_mode = #tpu.pipeline_mode<synchronous>, transform_indices = @transform_1, window_bounds = array<i64: 8, 1>}, {pipeline_mode = #tpu.pipeline_mode<synchronous>, transform_indices = @transform_2, window_bounds = array<i64: 8, 1>}, {pipeline_mode = #tpu.pipeline_mode<synchronous>, transform_indices = @transform_3, window_bounds = array<i64: 8, 8>}, {pipeline_mode = #tpu.pipeline_mode<synchronous>, transform_indices = @transform_4, window_bounds = array<i64: 8, 1>}, {pipeline_mode = #tpu.pipeline_mode<synchronous>, transform_indices = @transform_5, window_bounds = array<i64: 8, 1>}, {transform_indices = @transform_6, window_bounds = array<i64: 72, 256>}, {transform_indices = @transform_7, window_bounds = array<i64: 8, 256>}, {transform_indices = @transform_8, window_bounds = array<i64: 8, 256>}]} {
    %c0 = arith.constant 0 : index
    %c0_0 = arith.constant 0 : index
    %0 = vector.load %arg2[%c0, %c0_0] : memref<8x72xbf16, #tpu.memory_space<vmem>>, vector<8x72xbf16>
    %c0_1 = arith.constant 0 : index
    %c0_2 = arith.constant 0 : index
    %1 = vector.load %arg8[%c0_1, %c0_2] : memref<72x256xbf16, #tpu.memory_space<vmem>>, vector<72x256xbf16>
    %cst = arith.constant dense<0.000000e+00> : vector<8x256xf32>
    %2 = tpu.matmul %0, %1, %cst {dimension_numbers = #tpu.dot_dimension_numbers<[1], [0], [0], [1], [0, 0, 1, 1], [], []>} : vector<8x72xbf16>, vector<72x256xbf16>, vector<8x256xf32> -> vector<8x256xf32>
    %c0_3 = arith.constant 0 : index
    %c0_4 = arith.constant 0 : index
    %3 = vector.load %arg5[%c0_3, %c0_4] : memref<8x8xbf16, #tpu.memory_space<vmem>>, vector<8x8xbf16>
    %c0_5 = arith.constant 0 : index
    %c0_6 = arith.constant 0 : index
    %4 = vector.load %arg9[%c0_5, %c0_6] : memref<8x256xbf16, #tpu.memory_space<vmem>>, vector<8x256xbf16>
    %cst_7 = arith.constant dense<0.000000e+00> : vector<8x256xf32>
    %5 = tpu.matmul %3, %4, %cst_7 {dimension_numbers = #tpu.dot_dimension_numbers<[1], [0], [0], [1], [0, 0, 1, 1], [], []>} : vector<8x8xbf16>, vector<8x256xbf16>, vector<8x256xf32> -> vector<8x256xf32>
    %c0_i32 = arith.constant 0 : i32
    %6 = arith.cmpi eq, %arg0, %c0_i32 : i32
    %c0_i32_8 = arith.constant 0 : i32
    %7 = arith.cmpi eq, %arg1, %c0_i32_8 : i32
    %8 = arith.andi %6, %7 : i1
    %9 = arith.extui %8 : i1 to i32
    %c0_i32_9 = arith.constant 0 : i32
    %10 = arith.cmpi ne, %9, %c0_i32_9 : i32
    scf.if %10 {
      %cst_13 = arith.constant 0.000000e+00 : f32
      %17 = vector.broadcast %cst_13 : f32 to vector<8x1xf32>
      %c0_14 = arith.constant 0 : index
      %c0_15 = arith.constant 0 : index
      %18 = vector.load %arg11[%c0_14, %c0_15] : memref<8x1xf32, #tpu.memory_space<vmem>>, vector<8x1xf32>
      tpu.vector_store %arg11[%c0_14, %c0_15], %17 {strides = array<i32>} : memref<8x1xf32, #tpu.memory_space<vmem>>, vector<8x1xf32>,
      %cst_16 = arith.constant 0.000000e+00 : f32
      %19 = vector.broadcast %cst_16 : f32 to vector<8x1xf32>
      %c0_17 = arith.constant 0 : index
      %c0_18 = arith.constant 0 : index
      %20 = vector.load %arg12[%c0_17, %c0_18] : memref<8x1xf32, #tpu.memory_space<vmem>>, vector<8x1xf32>
      tpu.vector_store %arg12[%c0_17, %c0_18], %19 {strides = array<i32>} : memref<8x1xf32, #tpu.memory_space<vmem>>, vector<8x1xf32>,
      %cst_19 = arith.constant 0.000000e+00 : f32
      %21 = vector.broadcast %cst_19 : f32 to vector<8x1xf32>
      %c0_20 = arith.constant 0 : index
      %c0_21 = arith.constant 0 : index
      %22 = vector.load %arg13[%c0_20, %c0_21] : memref<8x1xf32, #tpu.memory_space<vmem>>, vector<8x1xf32>
      tpu.vector_store %arg13[%c0_20, %c0_21], %21 {strides = array<i32>} : memref<8x1xf32, #tpu.memory_space<vmem>>, vector<8x1xf32>,
      %cst_22 = arith.constant 0.000000e+00 : f32
      %23 = vector.broadcast %cst_22 : f32 to vector<8x1xf32>
      %c0_23 = arith.constant 0 : index
      %c0_24 = arith.constant 0 : index
      %24 = vector.load %arg14[%c0_23, %c0_24] : memref<8x1xf32, #tpu.memory_space<vmem>>, vector<8x1xf32>
      tpu.vector_store %arg14[%c0_23, %c0_24], %23 {strides = array<i32>} : memref<8x1xf32, #tpu.memory_space<vmem>>, vector<8x1xf32>,
    } else {
    }
    %c0_i32_10 = arith.constant 0 : i32
    %11 = arith.cmpi eq, %arg0, %c0_i32_10 : i32
    %12 = arith.extui %11 : i1 to i32
    %c0_i32_11 = arith.constant 0 : i32
    %13 = arith.cmpi ne, %12, %c0_i32_11 : i32
    scf.if %13 {
      %c0_13 = arith.constant 0 : index
      %c0_14 = arith.constant 0 : index
      %17 = vector.load %arg11[%c0_13, %c0_14] : memref<8x1xf32, #tpu.memory_space<vmem>>, vector<8x1xf32>
      %cst_15 = arith.constant dense<0.000000e+00> : vector<8xf32>
      %18 = vector.multi_reduction <add>, %2, %cst_15 [1] : vector<8x256xf32> to vector<8xf32>
      %19 = vector.shape_cast %18 : vector<8xf32> to vector<8x1xf32>
      %20 = arith.addf %17, %19 : vector<8x1xf32>
      %c0_16 = arith.constant 0 : index
      %c0_17 = arith.constant 0 : index
      %21 = vector.load %arg11[%c0_16, %c0_17] : memref<8x1xf32, #tpu.memory_space<vmem>>, vector<8x1xf32>
      tpu.vector_store %arg11[%c0_16, %c0_17], %20 {strides = array<i32>} : memref<8x1xf32, #tpu.memory_space<vmem>>, vector<8x1xf32>,
      %c0_18 = arith.constant 0 : index
      %c0_19 = arith.constant 0 : index
      %22 = vector.load %arg12[%c0_18, %c0_19] : memref<8x1xf32, #tpu.memory_space<vmem>>, vector<8x1xf32>
      %23 = arith.mulf %2, %2 : vector<8x256xf32>
      %cst_20 = arith.constant dense<0.000000e+00> : vector<8xf32>
      %24 = vector.multi_reduction <add>, %23, %cst_20 [1] : vector<8x256xf32> to vector<8xf32>
      %25 = vector.shape_cast %24 : vector<8xf32> to vector<8x1xf32>
      %26 = arith.addf %22, %25 : vector<8x1xf32>
      %c0_21 = arith.constant 0 : index
      %c0_22 = arith.constant 0 : index
      %27 = vector.load %arg12[%c0_21, %c0_22] : memref<8x1xf32, #tpu.memory_space<vmem>>, vector<8x1xf32>
      tpu.vector_store %arg12[%c0_21, %c0_22], %26 {strides = array<i32>} : memref<8x1xf32, #tpu.memory_space<vmem>>, vector<8x1xf32>,
      %c0_23 = arith.constant 0 : index
      %c0_24 = arith.constant 0 : index
      %28 = vector.load %arg13[%c0_23, %c0_24] : memref<8x1xf32, #tpu.memory_space<vmem>>, vector<8x1xf32>
      %cst_25 = arith.constant dense<0.000000e+00> : vector<8xf32>
      %29 = vector.multi_reduction <add>, %5, %cst_25 [1] : vector<8x256xf32> to vector<8xf32>
      %30 = vector.shape_cast %29 : vector<8xf32> to vector<8x1xf32>
      %31 = arith.addf %28, %30 : vector<8x1xf32>
      %c0_26 = arith.constant 0 : index
      %c0_27 = arith.constant 0 : index
      %32 = vector.load %arg13[%c0_26, %c0_27] : memref<8x1xf32, #tpu.memory_space<vmem>>, vector<8x1xf32>
      tpu.vector_store %arg13[%c0_26, %c0_27], %31 {strides = array<i32>} : memref<8x1xf32, #tpu.memory_space<vmem>>, vector<8x1xf32>,
      %c0_28 = arith.constant 0 : index
      %c0_29 = arith.constant 0 : index
      %33 = vector.load %arg14[%c0_28, %c0_29] : memref<8x1xf32, #tpu.memory_space<vmem>>, vector<8x1xf32>
      %34 = arith.mulf %5, %5 : vector<8x256xf32>
      %cst_30 = arith.constant dense<0.000000e+00> : vector<8xf32>
      %35 = vector.multi_reduction <add>, %34, %cst_30 [1] : vector<8x256xf32> to vector<8xf32>
      %36 = vector.shape_cast %35 : vector<8xf32> to vector<8x1xf32>
      %37 = arith.addf %33, %36 : vector<8x1xf32>
      %c0_31 = arith.constant 0 : index
      %c0_32 = arith.constant 0 : index
      %38 = vector.load %arg14[%c0_31, %c0_32] : memref<8x1xf32, #tpu.memory_space<vmem>>, vector<8x1xf32>
      tpu.vector_store %arg14[%c0_31, %c0_32], %37 {strides = array<i32>} : memref<8x1xf32, #tpu.memory_space<vmem>>, vector<8x1xf32>,
    } else {
    }
    %c1_i32 = arith.constant 1 : i32
    %14 = arith.cmpi eq, %arg0, %c1_i32 : i32
    %15 = arith.extui %14 : i1 to i32
    %c0_i32_12 = arith.constant 0 : i32
    %16 = arith.cmpi ne, %15, %c0_i32_12 : i32
    scf.if %16 {
      %c0_13 = arith.constant 0 : index
      %c0_14 = arith.constant 0 : index
      %17 = vector.load %arg11[%c0_13, %c0_14] : memref<8x1xf32, #tpu.memory_space<vmem>>, vector<8x1xf32>
      %cst_15 = arith.constant 0.001953125 : f32
      %18 = vector.broadcast %cst_15 : f32 to vector<8x1xf32>
      %19 = arith.mulf %17, %18 : vector<8x1xf32>
      %c0_16 = arith.constant 0 : index
      %c0_17 = arith.constant 0 : index
      %20 = vector.load %arg12[%c0_16, %c0_17] : memref<8x1xf32, #tpu.memory_space<vmem>>, vector<8x1xf32>
      %cst_18 = arith.constant 0.001953125 : f32
      %21 = vector.broadcast %cst_18 : f32 to vector<8x1xf32>
      %22 = arith.mulf %20, %21 : vector<8x1xf32>
      %23 = arith.mulf %19, %19 : vector<8x1xf32>
      %24 = arith.subf %22, %23 : vector<8x1xf32>
      %25 = vector.broadcast %19 : vector<8x1xf32> to vector<8x256xf32>
      %26 = arith.subf %2, %25 : vector<8x256xf32>
      %cst_19 = arith.constant 9.99999974E-6 : f32
      %27 = vector.broadcast %cst_19 : f32 to vector<8x1xf32>
      %28 = arith.addf %24, %27 : vector<8x1xf32>
      %29 = math.rsqrt %28 : vector<8x1xf32>
      %30 = vector.broadcast %29 : vector<8x1xf32> to vector<8x256xf32>
      %31 = arith.mulf %26, %30 : vector<8x256xf32>
      %c0_20 = arith.constant 0 : index
      %c0_21 = arith.constant 0 : index
      %32 = vector.load %arg3[%c0_20, %c0_21] : memref<8x1xf32, #tpu.memory_space<vmem>>, vector<8x1xf32>
      %33 = vector.broadcast %32 : vector<8x1xf32> to vector<8x256xf32>
      %34 = arith.mulf %31, %33 : vector<8x256xf32>
      %c0_22 = arith.constant 0 : index
      %c0_23 = arith.constant 0 : index
      %35 = vector.load %arg4[%c0_22, %c0_23] : memref<8x1xf32, #tpu.memory_space<vmem>>, vector<8x1xf32>
      %36 = vector.broadcast %35 : vector<8x1xf32> to vector<8x256xf32>
      %37 = arith.addf %34, %36 : vector<8x256xf32>
      %c0_24 = arith.constant 0 : index
      %c0_25 = arith.constant 0 : index
      %38 = vector.load %arg13[%c0_24, %c0_25] : memref<8x1xf32, #tpu.memory_space<vmem>>, vector<8x1xf32>
      %cst_26 = arith.constant 0.001953125 : f32
      %39 = vector.broadcast %cst_26 : f32 to vector<8x1xf32>
      %40 = arith.mulf %38, %39 : vector<8x1xf32>
      %c0_27 = arith.constant 0 : index
      %c0_28 = arith.constant 0 : index
      %41 = vector.load %arg14[%c0_27, %c0_28] : memref<8x1xf32, #tpu.memory_space<vmem>>, vector<8x1xf32>
      %cst_29 = arith.constant 0.001953125 : f32
      %42 = vector.broadcast %cst_29 : f32 to vector<8x1xf32>
      %43 = arith.mulf %41, %42 : vector<8x1xf32>
      %44 = arith.mulf %40, %40 : vector<8x1xf32>
      %45 = arith.subf %43, %44 : vector<8x1xf32>
      %46 = vector.broadcast %40 : vector<8x1xf32> to vector<8x256xf32>
      %47 = arith.subf %5, %46 : vector<8x256xf32>
      %cst_30 = arith.constant 9.99999974E-6 : f32
      %48 = vector.broadcast %cst_30 : f32 to vector<8x1xf32>
      %49 = arith.addf %45, %48 : vector<8x1xf32>
      %50 = math.rsqrt %49 : vector<8x1xf32>
      %51 = vector.broadcast %50 : vector<8x1xf32> to vector<8x256xf32>
      %52 = arith.mulf %47, %51 : vector<8x256xf32>
      %c0_31 = arith.constant 0 : index
      %c0_32 = arith.constant 0 : index
      %53 = vector.load %arg6[%c0_31, %c0_32] : memref<8x1xf32, #tpu.memory_space<vmem>>, vector<8x1xf32>
      %54 = vector.broadcast %53 : vector<8x1xf32> to vector<8x256xf32>
      %55 = arith.mulf %52, %54 : vector<8x256xf32>
      %c0_33 = arith.constant 0 : index
      %c0_34 = arith.constant 0 : index
      %56 = vector.load %arg7[%c0_33, %c0_34] : memref<8x1xf32, #tpu.memory_space<vmem>>, vector<8x1xf32>
      %57 = vector.broadcast %56 : vector<8x1xf32> to vector<8x256xf32>
      %58 = arith.addf %55, %57 : vector<8x256xf32>
      %59 = arith.addf %37, %58 : vector<8x256xf32>
      %cst_35 = arith.constant 0.000000e+00 : f32
      %60 = vector.broadcast %cst_35 : f32 to vector<8x256xf32>
      %61 = arith.maximumf %59, %60 : vector<8x256xf32>
      %c0_36 = arith.constant 0 : index
      %c0_37 = arith.constant 0 : index
      %62 = vector.load %arg10[%c0_36, %c0_37] : memref<8x256xf32, #tpu.memory_space<vmem>>, vector<8x256xf32>
      tpu.vector_store %arg10[%c0_36, %c0_37], %61 {strides = array<i32>} : memref<8x256xf32, #tpu.memory_space<vmem>>, vector<8x256xf32>,
    } else {
    }
    return
  }
  func.func @transform_0(%arg0: i32, %arg1: i32) -> (i32, i32) {
    %c0_i32 = arith.constant 0 : i32
    %c0_i32_0 = arith.constant 0 : i32
    %c0_i32_1 = arith.constant 0 : i32
    return %c0_i32, %c0_i32_0 : i32, i32
  }
  func.func @transform_1(%arg0: i32, %arg1: i32) -> (i32, i32) {
    %c0_i32 = arith.constant 0 : i32
    %c0_i32_0 = arith.constant 0 : i32
    %c0_i32_1 = arith.constant 0 : i32
    return %c0_i32, %c0_i32_0 : i32, i32
  }
  func.func @transform_2(%arg0: i32, %arg1: i32) -> (i32, i32) {
    %c0_i32 = arith.constant 0 : i32
    %c0_i32_0 = arith.constant 0 : i32
    %c0_i32_1 = arith.constant 0 : i32
    return %c0_i32, %c0_i32_0 : i32, i32
  }
  func.func @transform_3(%arg0: i32, %arg1: i32) -> (i32, i32) {
    %c0_i32 = arith.constant 0 : i32
    %c0_i32_0 = arith.constant 0 : i32
    %c0_i32_1 = arith.constant 0 : i32
    return %c0_i32, %c0_i32_0 : i32, i32
  }
  func.func @transform_4(%arg0: i32, %arg1: i32) -> (i32, i32) {
    %c0_i32 = arith.constant 0 : i32
    %c0_i32_0 = arith.constant 0 : i32
    %c0_i32_1 = arith.constant 0 : i32
    return %c0_i32, %c0_i32_0 : i32, i32
  }
  func.func @transform_5(%arg0: i32, %arg1: i32) -> (i32, i32) {
    %c0_i32 = arith.constant 0 : i32
    %c0_i32_0 = arith.constant 0 : i32
    %c0_i32_1 = arith.constant 0 : i32
    return %c0_i32, %c0_i32_0 : i32, i32
  }
  func.func @transform_6(%arg0: i32, %arg1: i32) -> (i32, i32) {
    %c0_i32 = arith.constant 0 : i32
    %c0_i32_0 = arith.constant 0 : i32
    return %c0_i32, %arg1 : i32, i32
  }
  func.func @transform_7(%arg0: i32, %arg1: i32) -> (i32, i32) {
    %c0_i32 = arith.constant 0 : i32
    %c0_i32_0 = arith.constant 0 : i32
    return %c0_i32, %arg1 : i32, i32
  }
  func.func @transform_8(%arg0: i32, %arg1: i32) -> (i32, i32) {
    %0 = arith.muli %arg1, %arg0 : i32
    %c0_i32 = arith.constant 0 : i32
    %c0_i32_0 = arith.constant 0 : i32
    return %c0_i32, %0 : i32, i32
  }
}

</mosaic_0001>

<llo_original>
// kernel: basic_block_forward.2
$region0: #{basic_block_forward.2}
  #allocation0 [shape = 'u32[]', space=smem, size = 0x4, offset = 0x4, fixed_abs, tag = 'smem constant byte address 0x4 - core index']
  #allocation1 [shape = 'u32[144,128]{1,0:T(1,128)}', space=vmem, size = 0x12000, scoped, tag = 'internal scratch']
  #allocation2 [shape = 'f32[8,1]{1,0:T(8,128)}', space=vmem, size = 0x1000, scoped, tag = 'scratch operand']
  #allocation3 [shape = 'f32[8,1]{1,0:T(8,128)}', space=vmem, size = 0x1000, scoped, tag = 'scratch operand']
  %s0 = inlined_call_operand.vmem [shape: bf16[8,40], index: 0, kind: input, shape index: {}]
  %s1 = inlined_call_operand.vmem [shape: f32[8,1], index: 1, kind: input, shape index: {}]
  %s2 = inlined_call_operand.vmem [shape: f32[8,1], index: 2, kind: input, shape index: {}]
  %s3 = inlined_call_operand.vmem [shape: bf16[40,512], index: 3, kind: input, shape index: {}]
  %s4 = inlined_call_operand.vmem [shape: f32[8,512], index: 4, kind: output, shape index: {}]
  %s5 = sld [smem:[#allocation0]]
  $region99: #{basic_block_forward.2} parent=0
    _
  %s7 = ssub.s32 1, %s5
  %s8 = scalar_select 0, %s7, %s5
  $region1: #{basic_block_forward.2} parent=0
    #allocation4 [shape = 'u8[40960]{0}', space=vmem, size = 0xa000, scoped, tag = 'input window, operand 3']
    loop: start=0, step=1, limit=6
    $region2: #{basic_block_forward.2} parent=1 // loop_pre_header
      _
    $region3: #{basic_block_forward.2} parent=1 // loop_header
      %s10 = sphi 0, %s14
      %p11 = scmp.ge.s32.totalorder %s10, 6
      %s17 = sphi 0, %s29
      %s18 = sphi 0, %s25
      %s19 = sphi 0, %s17
      %s20 = sphi 0, %s18
      %s21 = sphi 0, %s19
      %s22 = sphi 0, %s20
      %s30 = sphi 0, %s30
      %s32 = sphi 0, %s30
      %s33 = sphi 0, %s32
      %s47 = sphi 0, %s33
      %s51 = sphi 0, %s51
      %s53 = sphi 0, %s51
      %s54 = sphi 0, %s53
      %s68 = sphi 0, %s54
      %s72 = sphi 0, %s72
      %s74 = sphi 0, %s72
      %s75 = sphi 0, %s74
      %s89 = sphi 0, %s75
      %s95 = sphi 0, %s97
      %s98 = sphi 0, %s95
      %s99 = sphi 0, %s98
      %s115 = sphi 0, %s99
      %s123 = sphi 0, %s125
      %s126 = sphi 0, %s123
      %s127 = sphi 0, %s126
      %s143 = sphi 0, %s127
    $region4: #{basic_block_forward.2} parent=1 // loop_header_branch
      %13 = sbr.rel (%p11) target = $region8
    $region5: #{basic_block_forward.2} parent=1 // loop_body
      %s15 = ssub.s32 %s10, 1
      %s16 = ssub.s32 %s10, 2
      %s23 = sadd.s32 1, %s18
      %p24 = scmp.ge.s32.totalorder %s23, 2
      %s25 = scalar_select %p24, 0, %s23
      %s26 = sadd.s32 1, %s17
      %s27 = scalar_select %p24, %s26, %s17
      %p28 = scmp.ge.s32.totalorder %s27, 2
      %s29 = scalar_select %p28, 0, %s27
      %s31 = sadd.s32 %s30, 1
      %p34 = scmp.eq.s32.totalorder %s10, 3
      %p35 = scmp.ne.s32.totalorder %s30, %s32
      %p36 = scmp.eq.s32.totalorder %s10, 0
      %p37 = por %p35, %p36
      %p38 = scmp.ne.s32.totalorder %s30, %s32
      %p39 = scmp.eq.s32.totalorder %s15, 3
      %p40 = por %p38, %p39
      %p41 = scmp.ne.s32.totalorder %s32, %s33
      %p42 = scmp.eq.s32.totalorder %s15, 0
      %p43 = por %p41, %p42
      %p44 = scmp.ne.s32.totalorder %s32, %s33
      %p45 = scmp.eq.s32.totalorder %s16, 3
      %p46 = por %p44, %p45
      %p48 = scmp.ne.s32.totalorder %s33, %s47
      %p49 = scmp.eq.s32.totalorder %s16, 0
      %p50 = por %p48, %p49
      %s52 = sadd.s32 %s51, 1
      %p55 = scmp.eq.s32.totalorder %s10, 3
      %p56 = scmp.ne.s32.totalorder %s51, %s53
      %p57 = scmp.eq.s32.totalorder %s10, 0
      %p58 = por %p56, %p57
      %p59 = scmp.ne.s32.totalorder %s51, %s53
      %p60 = scmp.eq.s32.totalorder %s15, 3
      %p61 = por %p59, %p60
      %p62 = scmp.ne.s32.totalorder %s53, %s54
      %p63 = scmp.eq.s32.totalorder %s15, 0
      %p64 = por %p62, %p63
      %p65 = scmp.ne.s32.totalorder %s53, %s54
      %p66 = scmp.eq.s32.totalorder %s16, 3
      %p67 = por %p65, %p66
      %p69 = scmp.ne.s32.totalorder %s54, %s68
      %p70 = scmp.eq.s32.totalorder %s16, 0
      %p71 = por %p69, %p70
      %s73 = sadd.s32 %s72, 1
      %p76 = scmp.eq.s32.totalorder %s10, 3
      %p77 = scmp.ne.s32.totalorder %s72, %s74
      %p78 = scmp.eq.s32.totalorder %s10, 0
      %p79 = por %p77, %p78
      %p80 = scmp.ne.s32.totalorder %s72, %s74
      %p81 = scmp.eq.s32.totalorder %s15, 3
      %p82 = por %p80, %p81
      %p83 = scmp.ne.s32.totalorder %s74, %s75
      %p84 = scmp.eq.s32.totalorder %s15, 0
      %p85 = por %p83, %p84
      %p86 = scmp.ne.s32.totalorder %s74, %s75
      %p87 = scmp.eq.s32.totalorder %s16, 3
      %p88 = por %p86, %p87
      %p90 = scmp.ne.s32.totalorder %s75, %s89
      %p91 = scmp.eq.s32.totalorder %s16, 0
      %p92 = por %p90, %p91
      %s93 = ssub.s32 %s18, %s25
      %p94 = scmp.eq.s32.totalorder %s93, 0
      %s96 = sadd.s32 %s95, 1
      %s97 = scalar_select %p94, %s95, %s96
      %p100 = pneg %p94
      %p101 = scmp.eq.s32.totalorder %s10, 3
      %p102 = por %p100, %p101
      %p103 = scmp.ne.s32.totalorder %s95, %s98
      %p104 = scmp.eq.s32.totalorder %s10, 0
      %p105 = por %p103, %p104
      %p106 = scmp.ne.s32.totalorder %s95, %s98
      %p107 = scmp.eq.s32.totalorder %s15, 3
      %p108 = por %p106, %p107
      %p109 = scmp.ne.s32.totalorder %s98, %s99
      %p110 = scmp.eq.s32.totalorder %s15, 0
      %p111 = por %p109, %p110
      %p112 = scmp.ne.s32.totalorder %s98, %s99
      %p113 = scmp.eq.s32.totalorder %s16, 3
      %p114 = por %p112, %p113
      %p116 = scmp.ne.s32.totalorder %s99, %s115
      %p117 = scmp.eq.s32.totalorder %s16, 0
      %p118 = por %p116, %p117
      %s119 = smul.u32 %s18, %s17
      %s120 = smul.u32 %s25, %s29
      %s121 = ssub.s32 %s119, %s120
      %p122 = scmp.eq.s32.totalorder %s121, 0
      %s124 = sadd.s32 %s123, 1
      %s125 = scalar_select %p122, %s123, %s124
      %p128 = pneg %p122
      %p129 = scmp.eq.s32.totalorder %s10, 3
      %p130 = por %p128, %p129
      %p131 = scmp.ne.s32.totalorder %s123, %s126
      %p132 = scmp.eq.s32.totalorder %s10, 0
      %p133 = por %p131, %p132
      %p134 = scmp.ne.s32.totalorder %s123, %s126
      %p135 = scmp.eq.s32.totalorder %s15, 3
      %p136 = por %p134, %p135
      %p137 = scmp.ne.s32.totalorder %s126, %s127
      %p138 = scmp.eq.s32.totalorder %s15, 0
      %p139 = por %p137, %p138
      %p140 = scmp.ne.s32.totalorder %s126, %s127
      %p141 = scmp.eq.s32.totalorder %s16, 3
      %p142 = por %p140, %p141
      %p144 = scmp.ne.s32.totalorder %s127, %s143
      %p145 = scmp.eq.s32.totalorder %s16, 0
      %p146 = por %p144, %p145
      %p147 = scmp.le.s32.totalorder 1, %s10
      %p148 = scmp.lt.s32.totalorder %s10, 5
      %p149 = pnand %p147, %p148
      %p150 = pneg %p149
      // Predicated region
      $region9: #{basic_block_forward.2} parent=5 // pred_check
        _
      $region10: #{basic_block_forward.2} parent=5 // pred_check_branch
        %152 = sbr.rel (%p149) target = $region12
      $region11: #{basic_block_forward.2} parent=5 // pred_region
        %s153 = ssub.s32 %s10, 1
        // Predicated region
        $region13: #{basic_block_forward.2} parent=11 // pred_check
          %p154 = pneg %p43
        $region14: #{basic_block_forward.2} parent=11 // pred_check_branch
          %156 = sbr.rel (%p154) target = $region16
        $region15: #{basic_block_forward.2} parent=11 // pred_region
          _
        $region16: #{basic_block_forward.2} parent=11 // pred_fallthru
          _
        // Predicated region
        $region17: #{basic_block_forward.2} parent=11 // pred_check
          %p157 = pneg %p64
        $region18: #{basic_block_forward.2} parent=11 // pred_check_branch
          %159 = sbr.rel (%p157) target = $region20
        $region19: #{basic_block_forward.2} parent=11 // pred_region
          _
        $region20: #{basic_block_forward.2} parent=11 // pred_fallthru
          _
        // Predicated region
        $region21: #{basic_block_forward.2} parent=11 // pred_check
          %p160 = pneg %p85
        $region22: #{basic_block_forward.2} parent=11 // pred_check_branch
          %162 = sbr.rel (%p160) target = $region24
        $region23: #{basic_block_forward.2} parent=11 // pred_region
          _
        $region24: #{basic_block_forward.2} parent=11 // pred_fallthru
          _
      $region12: #{basic_block_forward.2} parent=5 // pred_fallthru
        _
      %p163 = scmp.lt.s32.totalorder %s10, 4
      // Predicated region
      $region25: #{basic_block_forward.2} parent=5 // pred_check
        %p164 = pneg %p163
      $region26: #{basic_block_forward.2} parent=5 // pred_check_branch
        %166 = sbr.rel (%p164) target = $region28
      $region27: #{basic_block_forward.2} parent=5 // pred_region
        // Predicated region
        $region29: #{basic_block_forward.2} parent=27 // pred_check
          %p167 = pneg %p105
        $region30: #{basic_block_forward.2} parent=27 // pred_check_branch
          %169 = sbr.rel (%p167) target = $region32
        $region31: #{basic_block_forward.2} parent=27 // pred_region
          %s170 = sand.u32 %s95, 1
          %s171 = sand.u32 %s95, 1
          %s172 = smul.addr %s171, 40
          %s173 = scalar_lea.vmem [#allocation4], %s172
          %s174 = smul.u32 2, %s18
          %s175 = smul.addr %s174, 4
          %s176 = scalar_lea.vmem %s3, %s175
          // Predicated region
          $region33: #{basic_block_forward.2} parent=31 // pred_check
            _
          $region34: #{basic_block_forward.2} parent=31 // pred_check_branch
            %178 = sbr.rel (0) target = $region36
          $region35: #{basic_block_forward.2} parent=31 // pred_region
            // Predicated region
            $region37: #{basic_block_forward.2} parent=35 // pred_check
              _
            $region38: #{basic_block_forward.2} parent=35 // pred_check_branch
              %180 = sbr.rel (0) target = $region40
            $region39: #{basic_block_forward.2} parent=35 // pred_region
              // Predicated region
              $region52: #{basic_block_forward.2} parent=39 // pred_check
                _
              $region53: #{basic_block_forward.2} parent=39 // pred_check_branch
                %203 = sbr.rel (0) target = $region55
              $region54: #{basic_block_forward.2} parent=39 // pred_region
                loop: start=0, step=1, limit=1
                $region56: #{basic_block_forward.2} parent=54 // loop_pre_header
                  _
                $region57: #{basic_block_forward.2} parent=54 // loop_header
                  %s205 = sphi 0, %s209
                  %p206 = scmp.ge.s32.totalorder %s205, 1
                  %s210 = sphi %s176, %s176
                  %s211 = sphi %s173, %s173
                $region58: #{basic_block_forward.2} parent=54 // loop_header_branch
                  %208 = sbr.rel (%p206) target = $region62
                $region59: #{basic_block_forward.2} parent=54 // loop_body
                  %v212 = vld [vmem:[%s210] sm:$0xff]
                  %213 = vst [vmem:[%s211] sm:$0xff] %v212
                  %v214 = vld [vmem:[%s210 + $0x10] sm:$0xff]
                  %215 = vst [vmem:[%s211 + $0x8] sm:$0xff] %v214
                  %v216 = vld [vmem:[%s210 + $0x20] sm:$0xff]
                  %217 = vst [vmem:[%s211 + $0x10] sm:$0xff] %v216
                  %v218 = vld [vmem:[%s210 + $0x30] sm:$0xff]
                  %219 = vst [vmem:[%s211 + $0x18] sm:$0xff] %v218
                  %v220 = vld [vmem:[%s210 + $0x40] sm:$0xff]
                  %221 = vst [vmem:[%s211 + $0x20] sm:$0xff] %v220
                $region60: #{basic_block_forward.2} parent=54 // loop_footer
                  %s209 = sadd.s32 1, %s205
                $region61: #{basic_block_forward.2} parent=54 // loop_footer_branch
                  %204 = sbr.rel target = $region57
                $region62: #{basic_block_forward.2} parent=54 // loop_exit
                  _
              $region55: #{basic_block_forward.2} parent=39 // pred_fallthru
                _
              // Predicated region
              $region63: #{basic_block_forward.2} parent=39 // pred_check
                _
              $region64: #{basic_block_forward.2} parent=39 // pred_check_branch
                %223 = sbr.rel target = $region66
              $region65: #{basic_block_forward.2} parent=39 // pred_region
                _
              $region66: #{basic_block_forward.2} parent=39 // pred_fallthru
                _
            $region40: #{basic_block_forward.2} parent=35 // pred_fallthru
              _
            // Predicated region
            $region41: #{basic_block_forward.2} parent=35 // pred_check
              _
            $region42: #{basic_block_forward.2} parent=35 // pred_check_branch
              %182 = sbr.rel target = $region44
            $region43: #{basic_block_forward.2} parent=35 // pred_region
              loop: start=0, step=1, limit=1
              $region45: #{basic_block_forward.2} parent=43 // loop_pre_header
                _
              $region46: #{basic_block_forward.2} parent=43 // loop_header
                %s185 = sphi 0, %s189
                %p186 = scmp.ge.s32.totalorder %s185, 1
                %s190 = sphi %s176, %s176
                %s191 = sphi %s173, %s173
              $region47: #{basic_block_forward.2} parent=43 // loop_header_branch
                %188 = sbr.rel (%p186) target = $region51
              $region48: #{basic_block_forward.2} parent=43 // loop_body
                %v192 = vld [vmem:[%s190] sm:$0xff]
                %193 = vst [vmem:[%s191] sm:$0xff] %v192
                %v194 = vld [vmem:[%s190 + $0x10] sm:$0xff]
                %195 = vst [vmem:[%s191 + $0x8] sm:$0xff] %v194
                %v196 = vld [vmem:[%s190 + $0x20] sm:$0xff]
                %197 = vst [vmem:[%s191 + $0x10] sm:$0xff] %v196
                %v198 = vld [vmem:[%s190 + $0x30] sm:$0xff]
                %199 = vst [vmem:[%s191 + $0x18] sm:$0xff] %v198
                %v200 = vld [vmem:[%s190 + $0x40] sm:$0xff]
                %201 = vst [vmem:[%s191 + $0x20] sm:$0xff] %v200
              $region49: #{basic_block_forward.2} parent=43 // loop_footer
                %s189 = sadd.s32 1, %s185
              $region50: #{basic_block_forward.2} parent=43 // loop_footer_branch
                %184 = sbr.rel target = $region46
              $region51: #{basic_block_forward.2} parent=43 // loop_exit
                _
            $region44: #{basic_block_forward.2} parent=35 // pred_fallthru
              _
          $region36: #{basic_block_forward.2} parent=31 // pred_fallthru
            _
          %224 = vnop
        $region32: #{basic_block_forward.2} parent=27 // pred_fallthru
          _
      $region28: #{basic_block_forward.2} parent=5 // pred_fallthru
        _
      %p225 = scmp.le.s32.totalorder 1, %s10
      %p226 = scmp.lt.s32.totalorder %s10, 5
      %p227 = pnand %p225, %p226
      %p228 = pneg %p227
      // Predicated region
      $region67: #{basic_block_forward.2} parent=5 // pred_check
        _
      $region68: #{basic_block_forward.2} parent=5 // pred_check_branch
        %230 = sbr.rel (%p227) target = $region70
      $region69: #{basic_block_forward.2} parent=5 // pred_region
        %s231 = ssub.s32 %s10, 1
        %s232 = sand.u32 %s98, 1
        %s233 = sand.u32 %s98, 1
        %s234 = smul.addr %s233, 40
        %s235 = scalar_lea.vmem [#allocation4], %s234
        // Predicated region
        $region71: #{basic_block_forward.2} parent=69 // pred_check
          %p236 = pneg %p111
        $region72: #{basic_block_forward.2} parent=69 // pred_check_branch
          %238 = sbr.rel (%p236) target = $region74
        $region73: #{basic_block_forward.2} parent=69 // pred_region
          _
        $region74: #{basic_block_forward.2} parent=69 // pred_fallthru
          _
        %p239 = pneg %p43
        %p240 = pneg %p40
        %p241 = pneg %p64
        %p242 = pneg %p61
        %p243 = pneg %p85
        %p244 = pneg %p82
        %s245 = sand.u32 %s98, 1
        %s246 = sand.u32 %s98, 1
        %s247 = smul.addr %s246, 40
        %s248 = scalar_lea.vmem [#allocation4], %s247
        %p249 = pneg %p111
        %p250 = pneg %p108
        %p251 = pneg %p139
        %p252 = pneg %p136
        %s253 = smul.u32 %s20, %s19
        %s254 = smul.u32 2, %s253
        %p255 = scmp.lt.s32.totalorder %s254, 3
        %s256 = scalar_select %p255, %s254, 3
        %s257 = smul.addr %s256, 8
        %s258 = scalar_lea.vmem %s4, %s257
        %s259 = smul.u32 2, %s20
        %s260 = smul.u32 %s20, %s19
        %s261 = smul.u32 2, %s260
        %p262 = scmp.lt.s32.totalorder %s261, 3
        %s263 = scalar_select %p262, %s261, 3
        %s264 = smul.addr %s263, 8
        %s265 = scalar_lea.vmem %s4, %s264
        %s266 = smul.u32 %s20, %s19
        %s267 = smul.u32 2, %s266
        %v269 = vld [vmem:[%s0] sm:$0xf]
        %v270 = vld [vmem:[%s235] sm:$0xff]
        %v271 = vld [vmem:[%s235 + $0x8] sm:$0xff]
        %v272 = vld [vmem:[%s235 + $0x10] sm:$0xff]
        %v273 = vld [vmem:[%s235 + $0x18] sm:$0xff]
        %v274 = vld [vmem:[%s235 + $0x20] sm:$0xff]
        %v280 = vunpack.c.l.b16 %v270
        %v281 = vunpack.c.h.b16 %v270
        %v282 = vunpack.c.l.b16 %v271
        %v283 = vunpack.c.h.b16 %v271
        %v284 = vunpack.c.l.b16 %v272
        %v285 = vunpack.c.h.b16 %v272
        %v286 = vunpack.c.l.b16 %v273
        %v287 = vunpack.c.h.b16 %v273
        %v288 = vunpack.c.l.b16 %v274
        %v289 = vunpack.c.h.b16 %v274
        %v290 = vpack.c.b16 %v282, %v280
        %v291 = vpack.c.b16 %v283, %v281
        %v292 = vpack.c.b16 %v286, %v284
        %v293 = vpack.c.b16 %v287, %v285
        %v294 = vpack.c.b16 %v288, %v288
        %v295 = vpack.c.b16 %v289, %v289
        %vm300 = vcmask 326656
        %v302 = vsel %vm300, %v269, 0
        %vm304 = vcmask 1043456
        %v306 = vsel %vm304, %v294, 0
        %v309 = vsel %vm304, %v295, 0
        %311 = vmatprep.subr.bf16.mxu0 %v291
        %312 = vmatpush1.bf16.msra.mxu0 %v290
        %313 = vmatprep.subr.bf16.mxu0 %v293
        %314 = vmatpush1.bf16.msra.mxu0 %v292
        %315 = vmatprep.subr.bf16.mxu0 %v309
        %316 = vmatpush1.bf16.msra.mxu0 %v306
        %317 = vmatprep.subr.bf16.mxu0 0
        %318 = vmatpush1.bf16.msra.mxu0 0
        %319 = vmatprep.subr.bf16.mxu0 0
        %320 = vmatpush1.bf16.msra.mxu0 0
        %321 = vmatprep.subr.bf16.mxu0 0
        %322 = vmatpush1.bf16.msra.mxu0 0
        %323 = vmatprep.subr.bf16.mxu0 0
        %324 = vmatpush1.bf16.msra.mxu0 0
        %325 = vmatprep.subr.bf16.mxu0 0
        %326 = vmatpush1.bf16.msra.mxu0 0
        %327 = vmatprep.subr.bf16.mxu0 0
        %328 = vmatpush1.bf16.msra.mxu0 0
        %329 = vmatprep.subr.bf16.mxu0 0
        %330 = vmatpush1.bf16.msra.mxu0 0
        %331 = vmatprep.subr.bf16.mxu0 0
        %332 = vmatpush1.bf16.msra.mxu0 0
        %333 = vmatprep.subr.bf16.mxu0 0
        %334 = vmatpush1.bf16.msra.mxu0 0
        %335 = vmatprep.subr.bf16.mxu0 0
        %336 = vmatpush1.bf16.msra.mxu0 0
        %337 = vmatprep.subr.bf16.mxu0 0
        %338 = vmatpush1.bf16.msra.mxu0 0
        %339 = vmatprep.subr.bf16.mxu0 0
        %340 = vmatpush1.bf16.msra.mxu0 0
        %341 = vmatprep.subr.bf16.mxu0 0
        %342 = vmatpush1.bf16.msra.mxu0 0
        %343 = vmatprep.mubr.bf16.mxu0 0
        %344 = vmatmul.mubr.bf16.gmra.mrb[0].mxu0 %v302
        %v345 = vpop.f32.mrb[0].mxu0
        %v346 = vadd.f32 0.0, %v345
        %v347 = vpop.f32.mrb[0].mxu0
        %v348 = vadd.f32 0.0, %v347
        %v349 = vpop.f32.mrb[0].mxu0
        %v350 = vpop.f32.mrb[0].mxu0
        %351 = vdwg.mxu0
        %p352 = scmp.eq.s32.totalorder %s19, 0
        %p353 = scmp.eq.s32.totalorder %s20, 0
        %p354 = pnand %p352, %p353
        %p355 = pneg %p354
        // Predicated region
        $region75: #{basic_block_forward.2} parent=69 // pred_check
          _
        $region76: #{basic_block_forward.2} parent=69 // pred_check_branch
          %357 = sbr.rel (%p354) target = $region78
        $region77: #{basic_block_forward.2} parent=69 // pred_region
          %vm358 = vcmask 7168
          %359 = vst.msk [vmem:[#allocation2] sm:$0xff] %vm358, 0.0
          %360 = vst.msk [vmem:[#allocation3] sm:$0xff] %vm358, 0.0
        $region78: #{basic_block_forward.2} parent=69 // pred_fallthru
          _
        // Predicated region
        $region79: #{basic_block_forward.2} parent=69 // pred_check
          %p361 = pneg %p352
        $region80: #{basic_block_forward.2} parent=69 // pred_check_branch
          %363 = sbr.rel (%p361) target = $region82
        $region81: #{basic_block_forward.2} parent=69 // pred_region
          %v364 = vld [vmem:[#allocation2] sm:$0xff]
          %v365 = vadd.f32 %v346, %v348
          %366 = vadd.xlane.f32.xlu0 %v365
          %v367 = vpop.xlane.xlu0 %366
          %v368 = vadd.f32 %v364, %v367
          %vm369 = vcmask 7168
          %370 = vst.msk [vmem:[#allocation2] sm:$0xff] %vm369, %v368
          %v371 = vld [vmem:[#allocation3] sm:$0xff]
          %v372 = vmul.f32 %v346, %v346
          %v373 = vmul.f32 %v348, %v348
          %v374 = vadd.f32 %v372, %v373
          %375 = vadd.xlane.f32.xlu0 %v374
          %v376 = vpop.xlane.xlu0 %375
          %v377 = vadd.f32 %v371, %v376
          %378 = vst.msk [vmem:[#allocation3] sm:$0xff] %vm369, %v377
        $region82: #{basic_block_forward.2} parent=69 // pred_fallthru
          _
        %p379 = scmp.eq.s32.totalorder %s19, 1
        // Predicated region
        $region83: #{basic_block_forward.2} parent=69 // pred_check
          %p380 = pneg %p379
        $region84: #{basic_block_forward.2} parent=69 // pred_check_branch
          %382 = sbr.rel (%p380) target = $region86
        $region85: #{basic_block_forward.2} parent=69 // pred_region
          %v383 = vld [vmem:[#allocation2] sm:$0xff]
          %v384 = vmul.f32 %v383, 0.001953125
          %v385 = vld [vmem:[#allocation3] sm:$0xff]
          %v386 = vmul.f32 %v385, 0.001953125
          %v387 = vmul.f32 %v384, %v384
          %v388 = vsub.f32 %v386, %v387
          %390 = vset.pattern.permute.xlu0 0
          %391 = vperm.xlu0 %390, %v384
          %v392 = vpop.permute.xlu0 %391
          %v394 = vsub.f32 %v346, %v392
          %v395 = vsub.f32 %v348, %v392
          %v396 = vadd.f32 %v388, 1e-05
          %v397 = vrsqrt.pop %v396
          %399 = vset.pattern.permute.xlu0 0
          %400 = vperm.xlu0 %399, %v397
          %v401 = vpop.permute.xlu0 %400
          %v403 = vmul.f32 %v394, %v401
          %v404 = vmul.f32 %v395, %v401
          %v405 = vld [vmem:[%s1] sm:$0xff]
          %407 = vset.pattern.permute.xlu0 0
          %408 = vperm.xlu0 %407, %v405
          %v409 = vpop.permute.xlu0 %408
          %v411 = vmul.f32 %v403, %v409
          %v412 = vmul.f32 %v404, %v409
          %v413 = vld [vmem:[%s2] sm:$0xff]
          %415 = vset.pattern.permute.xlu0 0
          %416 = vperm.xlu0 %415, %v413
          %v417 = vpop.permute.xlu0 %416
          %v419 = vadd.f32 %v411, %v417
          %v420 = vadd.f32 %v412, %v417
          %v421 = vmax.f32 %v419, 0.0
          %v422 = vmax.f32 %v420, 0.0
          %423 = vst [vmem:[%s265] sm:$0xff] %v421
          %424 = vst [vmem:[%s265 + $0x8] sm:$0xff] %v422
        $region86: #{basic_block_forward.2} parent=69 // pred_fallthru
          _
        %s425 = smul.u32 %s20, %s19
        %s426 = smul.u32 2, %s425
        %p427 = scmp.lt.s32.totalorder %s426, 3
        %s428 = scalar_select %p427, %s426, 3
        %s429 = smul.addr %s428, 8
        %s430 = scalar_lea.vmem %s4, %s429
        // Predicated region
        $region87: #{basic_block_forward.2} parent=69 // pred_check
          %p431 = pneg %p136
        $region88: #{basic_block_forward.2} parent=69 // pred_check_branch
          %433 = sbr.rel (%p431) target = $region90
        $region89: #{basic_block_forward.2} parent=69 // pred_region
          %s434 = smul.u32 %s20, %s19
          %s435 = smul.u32 2, %s434
        $region90: #{basic_block_forward.2} parent=69 // pred_fallthru
          _
      $region70: #{basic_block_forward.2} parent=5 // pred_fallthru
        _
      %p436 = scmp.le.s32.totalorder 2, %s10
      // Predicated region
      $region91: #{basic_block_forward.2} parent=5 // pred_check
        %p437 = pneg %p436
      $region92: #{basic_block_forward.2} parent=5 // pred_check_branch
        %439 = sbr.rel (%p437) target = $region94
      $region93: #{basic_block_forward.2} parent=5 // pred_region
        %s440 = ssub.s32 %s10, 2
        // Predicated region
        $region95: #{basic_block_forward.2} parent=93 // pred_check
          %p441 = pneg %p142
        $region96: #{basic_block_forward.2} parent=93 // pred_check_branch
          %443 = sbr.rel (%p441) target = $region98
        $region97: #{basic_block_forward.2} parent=93 // pred_region
          %s444 = smul.u32 %s22, %s21
          %s445 = smul.u32 2, %s444
          %p446 = scmp.lt.s32.totalorder %s445, 3
          %s447 = scalar_select %p446, %s445, 3
          %s448 = smul.addr %s447, 8
          %s449 = scalar_lea.vmem %s4, %s448
        $region98: #{basic_block_forward.2} parent=93 // pred_fallthru
          _
      $region94: #{basic_block_forward.2} parent=5 // pred_fallthru
        _
    $region6: #{basic_block_forward.2} parent=1 // loop_footer
      %s14 = sadd.s32 1, %s10
    $region7: #{basic_block_forward.2} parent=1 // loop_footer_branch
      %9 = sbr.rel target = $region3
    $region8: #{basic_block_forward.2} parent=1 // loop_exit
      _

// kernel: basic_block_forward.3
$region0: #{basic_block_forward.3}
  #allocation0 [shape = 'u32[]', space=smem, size = 0x4, offset = 0x4, fixed_abs, tag = 'smem constant byte address 0x4 - core index']
  #allocation1 [shape = 'u32[144,128]{1,0:T(1,128)}', space=vmem, size = 0x12000, scoped, tag = 'internal scratch']
  #allocation2 [shape = 'f32[8,1]{1,0:T(8,128)}', space=vmem, size = 0x1000, scoped, tag = 'scratch operand']
  #allocation3 [shape = 'f32[8,1]{1,0:T(8,128)}', space=vmem, size = 0x1000, scoped, tag = 'scratch operand']
  #allocation4 [shape = 'f32[8,1]{1,0:T(8,128)}', space=vmem, size = 0x1000, scoped, tag = 'scratch operand']
  #allocation5 [shape = 'f32[8,1]{1,0:T(8,128)}', space=vmem, size = 0x1000, scoped, tag = 'scratch operand']
  %s0 = inlined_call_operand.vmem [shape: bf16[8,72], index: 0, kind: input, shape index: {}]
  %s1 = inlined_call_operand.vmem [shape: f32[8,1], index: 1, kind: input, shape index: {}]
  %s2 = inlined_call_operand.vmem [shape: f32[8,1], index: 2, kind: input, shape index: {}]
  %s3 = inlined_call_operand.vmem [shape: bf16[8,8], index: 3, kind: input, shape index: {}]
  %s4 = inlined_call_operand.vmem [shape: f32[8,1], index: 4, kind: input, shape index: {}]
  %s5 = inlined_call_operand.vmem [shape: f32[8,1], index: 5, kind: input, shape index: {}]
  %s6 = inlined_call_operand.vmem [shape: bf16[72,512], index: 6, kind: input, shape index: {}]
  %s7 = inlined_call_operand.vmem [shape: bf16[8,512], index: 7, kind: input, shape index: {}]
  %s8 = inlined_call_operand.vmem [shape: f32[8,512], index: 8, kind: output, shape index: {}]
  %s9 = sld [smem:[#allocation0]]
  $region115: #{basic_block_forward.3} parent=0
    _
  %s11 = ssub.s32 1, %s9
  %s12 = scalar_select 0, %s11, %s9
  $region1: #{basic_block_forward.3} parent=0
    #allocation6 [shape = 'u8[73728]{0}', space=vmem, size = 0x12000, scoped, tag = 'input window, operand 6']
    loop: start=0, step=1, limit=6
    $region2: #{basic_block_forward.3} parent=1 // loop_pre_header
      _
    $region3: #{basic_block_forward.3} parent=1 // loop_header
      %s14 = sphi 0, %s18
      %p15 = scmp.ge.s32.totalorder %s14, 6
      %s21 = sphi 0, %s33
      %s22 = sphi 0, %s29
      %s23 = sphi 0, %s21
      %s24 = sphi 0, %s22
      %s25 = sphi 0, %s23
      %s26 = sphi 0, %s24
      %s34 = sphi 0, %s34
      %s36 = sphi 0, %s34
      %s37 = sphi 0, %s36
      %s51 = sphi 0, %s37
      %s55 = sphi 0, %s55
      %s57 = sphi 0, %s55
      %s58 = sphi 0, %s57
      %s72 = sphi 0, %s58
      %s76 = sphi 0, %s76
      %s78 = sphi 0, %s76
      %s79 = sphi 0, %s78
      %s93 = sphi 0, %s79
      %s97 = sphi 0, %s97
      %s99 = sphi 0, %s97
      %s100 = sphi 0, %s99
      %s114 = sphi 0, %s100
      %s118 = sphi 0, %s118
      %s120 = sphi 0, %s118
      %s121 = sphi 0, %s120
      %s135 = sphi 0, %s121
      %s139 = sphi 0, %s139
      %s141 = sphi 0, %s139
      %s142 = sphi 0, %s141
      %s156 = sphi 0, %s142
      %s162 = sphi 0, %s164
      %s165 = sphi 0, %s162
      %s166 = sphi 0, %s165
      %s182 = sphi 0, %s166
      %s188 = sphi 0, %s190
      %s191 = sphi 0, %s188
      %s192 = sphi 0, %s191
      %s208 = sphi 0, %s192
      %s216 = sphi 0, %s218
      %s219 = sphi 0, %s216
      %s220 = sphi 0, %s219
      %s236 = sphi 0, %s220
    $region4: #{basic_block_forward.3} parent=1 // loop_header_branch
      %17 = sbr.rel (%p15) target = $region8
    $region5: #{basic_block_forward.3} parent=1 // loop_body
      %s19 = ssub.s32 %s14, 1
      %s20 = ssub.s32 %s14, 2
      %s27 = sadd.s32 1, %s22
      %p28 = scmp.ge.s32.totalorder %s27, 2
      %s29 = scalar_select %p28, 0, %s27
      %s30 = sadd.s32 1, %s21
      %s31 = scalar_select %p28, %s30, %s21
      %p32 = scmp.ge.s32.totalorder %s31, 2
      %s33 = scalar_select %p32, 0, %s31
      %s35 = sadd.s32 %s34, 1
      %p38 = scmp.eq.s32.totalorder %s14, 3
      %p39 = scmp.ne.s32.totalorder %s34, %s36
      %p40 = scmp.eq.s32.totalorder %s14, 0
      %p41 = por %p39, %p40
      %p42 = scmp.ne.s32.totalorder %s34, %s36
      %p43 = scmp.eq.s32.totalorder %s19, 3
      %p44 = por %p42, %p43
      %p45 = scmp.ne.s32.totalorder %s36, %s37
      %p46 = scmp.eq.s32.totalorder %s19, 0
      %p47 = por %p45, %p46
      %p48 = scmp.ne.s32.totalorder %s36, %s37
      %p49 = scmp.eq.s32.totalorder %s20, 3
      %p50 = por %p48, %p49
      %p52 = scmp.ne.s32.totalorder %s37, %s51
      %p53 = scmp.eq.s32.totalorder %s20, 0
      %p54 = por %p52, %p53
      %s56 = sadd.s32 %s55, 1
      %p59 = scmp.eq.s32.totalorder %s14, 3
      %p60 = scmp.ne.s32.totalorder %s55, %s57
      %p61 = scmp.eq.s32.totalorder %s14, 0
      %p62 = por %p60, %p61
      %p63 = scmp.ne.s32.totalorder %s55, %s57
      %p64 = scmp.eq.s32.totalorder %s19, 3
      %p65 = por %p63, %p64
      %p66 = scmp.ne.s32.totalorder %s57, %s58
      %p67 = scmp.eq.s32.totalorder %s19, 0
      %p68 = por %p66, %p67
      %p69 = scmp.ne.s32.totalorder %s57, %s58
      %p70 = scmp.eq.s32.totalorder %s20, 3
      %p71 = por %p69, %p70
      %p73 = scmp.ne.s32.totalorder %s58, %s72
      %p74 = scmp.eq.s32.totalorder %s20, 0
      %p75 = por %p73, %p74
      %s77 = sadd.s32 %s76, 1
      %p80 = scmp.eq.s32.totalorder %s14, 3
      %p81 = scmp.ne.s32.totalorder %s76, %s78
      %p82 = scmp.eq.s32.totalorder %s14, 0
      %p83 = por %p81, %p82
      %p84 = scmp.ne.s32.totalorder %s76, %s78
      %p85 = scmp.eq.s32.totalorder %s19, 3
      %p86 = por %p84, %p85
      %p87 = scmp.ne.s32.totalorder %s78, %s79
      %p88 = scmp.eq.s32.totalorder %s19, 0
      %p89 = por %p87, %p88
      %p90 = scmp.ne.s32.totalorder %s78, %s79
      %p91 = scmp.eq.s32.totalorder %s20, 3
      %p92 = por %p90, %p91
      %p94 = scmp.ne.s32.totalorder %s79, %s93
      %p95 = scmp.eq.s32.totalorder %s20, 0
      %p96 = por %p94, %p95
      %s98 = sadd.s32 %s97, 1
      %p101 = scmp.eq.s32.totalorder %s14, 3
      %p102 = scmp.ne.s32.totalorder %s97, %s99
      %p103 = scmp.eq.s32.totalorder %s14, 0
      %p104 = por %p102, %p103
      %p105 = scmp.ne.s32.totalorder %s97, %s99
      %p106 = scmp.eq.s32.totalorder %s19, 3
      %p107 = por %p105, %p106
      %p108 = scmp.ne.s32.totalorder %s99, %s100
      %p109 = scmp.eq.s32.totalorder %s19, 0
      %p110 = por %p108, %p109
      %p111 = scmp.ne.s32.totalorder %s99, %s100
      %p112 = scmp.eq.s32.totalorder %s20, 3
      %p113 = por %p111, %p112
      %p115 = scmp.ne.s32.totalorder %s100, %s114
      %p116 = scmp.eq.s32.totalorder %s20, 0
      %p117 = por %p115, %p116
      %s119 = sadd.s32 %s118, 1
      %p122 = scmp.eq.s32.totalorder %s14, 3
      %p123 = scmp.ne.s32.totalorder %s118, %s120
      %p124 = scmp.eq.s32.totalorder %s14, 0
      %p125 = por %p123, %p124
      %p126 = scmp.ne.s32.totalorder %s118, %s120
      %p127 = scmp.eq.s32.totalorder %s19, 3
      %p128 = por %p126, %p127
      %p129 = scmp.ne.s32.totalorder %s120, %s121
      %p130 = scmp.eq.s32.totalorder %s19, 0
      %p131 = por %p129, %p130
      %p132 = scmp.ne.s32.totalorder %s120, %s121
      %p133 = scmp.eq.s32.totalorder %s20, 3
      %p134 = por %p132, %p133
      %p136 = scmp.ne.s32.totalorder %s121, %s135
      %p137 = scmp.eq.s32.totalorder %s20, 0
      %p138 = por %p136, %p137
      %s140 = sadd.s32 %s139, 1
      %p143 = scmp.eq.s32.totalorder %s14, 3
      %p144 = scmp.ne.s32.totalorder %s139, %s141
      %p145 = scmp.eq.s32.totalorder %s14, 0
      %p146 = por %p144, %p145
      %p147 = scmp.ne.s32.totalorder %s139, %s141
      %p148 = scmp.eq.s32.totalorder %s19, 3
      %p149 = por %p147, %p148
      %p150 = scmp.ne.s32.totalorder %s141, %s142
      %p151 = scmp.eq.s32.totalorder %s19, 0
      %p152 = por %p150, %p151
      %p153 = scmp.ne.s32.totalorder %s141, %s142
      %p154 = scmp.eq.s32.totalorder %s20, 3
      %p155 = por %p153, %p154
      %p157 = scmp.ne.s32.totalorder %s142, %s156
      %p158 = scmp.eq.s32.totalorder %s20, 0
      %p159 = por %p157, %p158
      %s160 = ssub.s32 %s22, %s29
      %p161 = scmp.eq.s32.totalorder %s160, 0
      %s163 = sadd.s32 %s162, 1
      %s164 = scalar_select %p161, %s162, %s163
      %p167 = pneg %p161
      %p168 = scmp.eq.s32.totalorder %s14, 3
      %p169 = por %p167, %p168
      %p170 = scmp.ne.s32.totalorder %s162, %s165
      %p171 = scmp.eq.s32.totalorder %s14, 0
      %p172 = por %p170, %p171
      %p173 = scmp.ne.s32.totalorder %s162, %s165
      %p174 = scmp.eq.s32.totalorder %s19, 3
      %p175 = por %p173, %p174
      %p176 = scmp.ne.s32.totalorder %s165, %s166
      %p177 = scmp.eq.s32.totalorder %s19, 0
      %p178 = por %p176, %p177
      %p179 = scmp.ne.s32.totalorder %s165, %s166
      %p180 = scmp.eq.s32.totalorder %s20, 3
      %p181 = por %p179, %p180
      %p183 = scmp.ne.s32.totalorder %s166, %s182
      %p184 = scmp.eq.s32.totalorder %s20, 0
      %p185 = por %p183, %p184
      %s186 = ssub.s32 %s22, %s29
      %p187 = scmp.eq.s32.totalorder %s186, 0
      %s189 = sadd.s32 %s188, 1
      %s190 = scalar_select %p187, %s188, %s189
      %p193 = pneg %p187
      %p194 = scmp.eq.s32.totalorder %s14, 3
      %p195 = por %p193, %p194
      %p196 = scmp.ne.s32.totalorder %s188, %s191
      %p197 = scmp.eq.s32.totalorder %s14, 0
      %p198 = por %p196, %p197
      %p199 = scmp.ne.s32.totalorder %s188, %s191
      %p200 = scmp.eq.s32.totalorder %s19, 3
      %p201 = por %p199, %p200
      %p202 = scmp.ne.s32.totalorder %s191, %s192
      %p203 = scmp.eq.s32.totalorder %s19, 0
      %p204 = por %p202, %p203
      %p205 = scmp.ne.s32.totalorder %s191, %s192
      %p206 = scmp.eq.s32.totalorder %s20, 3
      %p207 = por %p205, %p206
      %p209 = scmp.ne.s32.totalorder %s192, %s208
      %p210 = scmp.eq.s32.totalorder %s20, 0
      %p211 = por %p209, %p210
      %s212 = smul.u32 %s22, %s21
      %s213 = smul.u32 %s29, %s33
      %s214 = ssub.s32 %s212, %s213
      %p215 = scmp.eq.s32.totalorder %s214, 0
      %s217 = sadd.s32 %s216, 1
      %s218 = scalar_select %p215, %s216, %s217
      %p221 = pneg %p215
      %p222 = scmp.eq.s32.totalorder %s14, 3
      %p223 = por %p221, %p222
      %p224 = scmp.ne.s32.totalorder %s216, %s219
      %p225 = scmp.eq.s32.totalorder %s14, 0
      %p226 = por %p224, %p225
      %p227 = scmp.ne.s32.totalorder %s216, %s219
      %p228 = scmp.eq.s32.totalorder %s19, 3
      %p229 = por %p227, %p228
      %p230 = scmp.ne.s32.totalorder %s219, %s220
      %p231 = scmp.eq.s32.totalorder %s19, 0
      %p232 = por %p230, %p231
      %p233 = scmp.ne.s32.totalorder %s219, %s220
      %p234 = scmp.eq.s32.totalorder %s20, 3
      %p235 = por %p233, %p234
      %p237 = scmp.ne.s32.totalorder %s220, %s236
      %p238 = scmp.eq.s32.totalorder %s20, 0
      %p239 = por %p237, %p238
      %p240 = scmp.le.s32.totalorder 1, %s14
      %p241 = scmp.lt.s32.totalorder %s14, 5
      %p242 = pnand %p240, %p241
      %p243 = pneg %p242
      // Predicated region
      $region9: #{basic_block_forward.3} parent=5 // pred_check
        _
      $region10: #{basic_block_forward.3} parent=5 // pred_check_branch
        %245 = sbr.rel (%p242) target = $region12
      $region11: #{basic_block_forward.3} parent=5 // pred_region
        %s246 = ssub.s32 %s14, 1
        // Predicated region
        $region13: #{basic_block_forward.3} parent=11 // pred_check
          %p247 = pneg %p47
        $region14: #{basic_block_forward.3} parent=11 // pred_check_branch
          %249 = sbr.rel (%p247) target = $region16
        $region15: #{basic_block_forward.3} parent=11 // pred_region
          _
        $region16: #{basic_block_forward.3} parent=11 // pred_fallthru
          _
        // Predicated region
        $region17: #{basic_block_forward.3} parent=11 // pred_check
          %p250 = pneg %p68
        $region18: #{basic_block_forward.3} parent=11 // pred_check_branch
          %252 = sbr.rel (%p250) target = $region20
        $region19: #{basic_block_forward.3} parent=11 // pred_region
          _
        $region20: #{basic_block_forward.3} parent=11 // pred_fallthru
          _
        // Predicated region
        $region21: #{basic_block_forward.3} parent=11 // pred_check
          %p253 = pneg %p89
        $region22: #{basic_block_forward.3} parent=11 // pred_check_branch
          %255 = sbr.rel (%p253) target = $region24
        $region23: #{basic_block_forward.3} parent=11 // pred_region
          _
        $region24: #{basic_block_forward.3} parent=11 // pred_fallthru
          _
        // Predicated region
        $region25: #{basic_block_forward.3} parent=11 // pred_check
          %p256 = pneg %p110
        $region26: #{basic_block_forward.3} parent=11 // pred_check_branch
          %258 = sbr.rel (%p256) target = $region28
        $region27: #{basic_block_forward.3} parent=11 // pred_region
          _
        $region28: #{basic_block_forward.3} parent=11 // pred_fallthru
          _
        // Predicated region
        $region29: #{basic_block_forward.3} parent=11 // pred_check
          %p259 = pneg %p131
        $region30: #{basic_block_forward.3} parent=11 // pred_check_branch
          %261 = sbr.rel (%p259) target = $region32
        $region31: #{basic_block_forward.3} parent=11 // pred_region
          _
        $region32: #{basic_block_forward.3} parent=11 // pred_fallthru
          _
        // Predicated region
        $region33: #{basic_block_forward.3} parent=11 // pred_check
          %p262 = pneg %p152
        $region34: #{basic_block_forward.3} parent=11 // pred_check_branch
          %264 = sbr.rel (%p262) target = $region36
        $region35: #{basic_block_forward.3} parent=11 // pred_region
          _
        $region36: #{basic_block_forward.3} parent=11 // pred_fallthru
          _
      $region12: #{basic_block_forward.3} parent=5 // pred_fallthru
        _
      %p265 = scmp.lt.s32.totalorder %s14, 4
      // Predicated region
      $region37: #{basic_block_forward.3} parent=5 // pred_check
        %p266 = pneg %p265
      $region38: #{basic_block_forward.3} parent=5 // pred_check_branch
        %268 = sbr.rel (%p266) target = $region40
      $region39: #{basic_block_forward.3} parent=5 // pred_region
        // Predicated region
        $region41: #{basic_block_forward.3} parent=39 // pred_check
          %p269 = pneg %p172
        $region42: #{basic_block_forward.3} parent=39 // pred_check_branch
          %271 = sbr.rel (%p269) target = $region44
        $region43: #{basic_block_forward.3} parent=39 // pred_region
          %s272 = sand.u32 %s162, 1
          %s273 = sand.u32 %s162, 1
          %s274 = smul.addr %s273, 72
          %s275 = scalar_lea.vmem [#allocation6], %s274
          %s276 = smul.u32 2, %s22
          %s277 = smul.addr %s276, 4
          %s278 = scalar_lea.vmem %s6, %s277
          // Predicated region
          $region45: #{basic_block_forward.3} parent=43 // pred_check
            _
          $region46: #{basic_block_forward.3} parent=43 // pred_check_branch
            %280 = sbr.rel (0) target = $region48
          $region47: #{basic_block_forward.3} parent=43 // pred_region
            // Predicated region
            $region49: #{basic_block_forward.3} parent=47 // pred_check
              _
            $region50: #{basic_block_forward.3} parent=47 // pred_check_branch
              %282 = sbr.rel (0) target = $region52
            $region51: #{basic_block_forward.3} parent=47 // pred_region
              // Predicated region
              $region64: #{basic_block_forward.3} parent=51 // pred_check
                _
              $region65: #{basic_block_forward.3} parent=51 // pred_check_branch
                %313 = sbr.rel (0) target = $region67
              $region66: #{basic_block_forward.3} parent=51 // pred_region
                loop: start=0, step=1, limit=1
                $region68: #{basic_block_forward.3} parent=66 // loop_pre_header
                  _
                $region69: #{basic_block_forward.3} parent=66 // loop_header
                  %s315 = sphi 0, %s319
                  %p316 = scmp.ge.s32.totalorder %s315, 1
                  %s320 = sphi %s278, %s278
                  %s321 = sphi %s275, %s275
                $region70: #{basic_block_forward.3} parent=66 // loop_header_branch
                  %318 = sbr.rel (%p316) target = $region74
                $region71: #{basic_block_forward.3} parent=66 // loop_body
                  %v322 = vld [vmem:[%s320] sm:$0xff]
                  %323 = vst [vmem:[%s321] sm:$0xff] %v322
                  %v324 = vld [vmem:[%s320 + $0x10] sm:$0xff]
                  %325 = vst [vmem:[%s321 + $0x8] sm:$0xff] %v324
                  %v326 = vld [vmem:[%s320 + $0x20] sm:$0xff]
                  %327 = vst [vmem:[%s321 + $0x10] sm:$0xff] %v326
                  %v328 = vld [vmem:[%s320 + $0x30] sm:$0xff]
                  %329 = vst [vmem:[%s321 + $0x18] sm:$0xff] %v328
                  %v330 = vld [vmem:[%s320 + $0x40] sm:$0xff]
                  %331 = vst [vmem:[%s321 + $0x20] sm:$0xff] %v330
                  %v332 = vld [vmem:[%s320 + $0x50] sm:$0xff]
                  %333 = vst [vmem:[%s321 + $0x28] sm:$0xff] %v332
                  %v334 = vld [vmem:[%s320 + $0x60] sm:$0xff]
                  %335 = vst [vmem:[%s321 + $0x30] sm:$0xff] %v334
                  %v336 = vld [vmem:[%s320 + $0x70] sm:$0xff]
                  %337 = vst [vmem:[%s321 + $0x38] sm:$0xff] %v336
                  %v338 = vld [vmem:[%s320 + $0x80] sm:$0xff]
                  %339 = vst [vmem:[%s321 + $0x40] sm:$0xff] %v338
                $region72: #{basic_block_forward.3} parent=66 // loop_footer
                  %s319 = sadd.s32 1, %s315
                $region73: #{basic_block_forward.3} parent=66 // loop_footer_branch
                  %314 = sbr.rel target = $region69
                $region74: #{basic_block_forward.3} parent=66 // loop_exit
                  _
              $region67: #{basic_block_forward.3} parent=51 // pred_fallthru
                _
              // Predicated region
              $region75: #{basic_block_forward.3} parent=51 // pred_check
                _
              $region76: #{basic_block_forward.3} parent=51 // pred_check_branch
                %341 = sbr.rel target = $region78
              $region77: #{basic_block_forward.3} parent=51 // pred_region
                _
              $region78: #{basic_block_forward.3} parent=51 // pred_fallthru
                _
            $region52: #{basic_block_forward.3} parent=47 // pred_fallthru
              _
            // Predicated region
            $region53: #{basic_block_forward.3} parent=47 // pred_check
              _
            $region54: #{basic_block_forward.3} parent=47 // pred_check_branch
              %284 = sbr.rel target = $region56
            $region55: #{basic_block_forward.3} parent=47 // pred_region
              loop: start=0, step=1, limit=1
              $region57: #{basic_block_forward.3} parent=55 // loop_pre_header
                _
              $region58: #{basic_block_forward.3} parent=55 // loop_header
                %s287 = sphi 0, %s291
                %p288 = scmp.ge.s32.totalorder %s287, 1
                %s292 = sphi %s278, %s278
                %s293 = sphi %s275, %s275
              $region59: #{basic_block_forward.3} parent=55 // loop_header_branch
                %290 = sbr.rel (%p288) target = $region63
              $region60: #{basic_block_forward.3} parent=55 // loop_body
                %v294 = vld [vmem:[%s292] sm:$0xff]
                %295 = vst [vmem:[%s293] sm:$0xff] %v294
                %v296 = vld [vmem:[%s292 + $0x10] sm:$0xff]
                %297 = vst [vmem:[%s293 + $0x8] sm:$0xff] %v296
                %v298 = vld [vmem:[%s292 + $0x20] sm:$0xff]
                %299 = vst [vmem:[%s293 + $0x10] sm:$0xff] %v298
                %v300 = vld [vmem:[%s292 + $0x30] sm:$0xff]
                %301 = vst [vmem:[%s293 + $0x18] sm:$0xff] %v300
                %v302 = vld [vmem:[%s292 + $0x40] sm:$0xff]
                %303 = vst [vmem:[%s293 + $0x20] sm:$0xff] %v302
                %v304 = vld [vmem:[%s292 + $0x50] sm:$0xff]
                %305 = vst [vmem:[%s293 + $0x28] sm:$0xff] %v304
                %v306 = vld [vmem:[%s292 + $0x60] sm:$0xff]
                %307 = vst [vmem:[%s293 + $0x30] sm:$0xff] %v306
                %v308 = vld [vmem:[%s292 + $0x70] sm:$0xff]
                %309 = vst [vmem:[%s293 + $0x38] sm:$0xff] %v308
                %v310 = vld [vmem:[%s292 + $0x80] sm:$0xff]
                %311 = vst [vmem:[%s293 + $0x40] sm:$0xff] %v310
              $region61: #{basic_block_forward.3} parent=55 // loop_footer
                %s291 = sadd.s32 1, %s287
              $region62: #{basic_block_forward.3} parent=55 // loop_footer_branch
                %286 = sbr.rel target = $region58
              $region63: #{basic_block_forward.3} parent=55 // loop_exit
                _
            $region56: #{basic_block_forward.3} parent=47 // pred_fallthru
              _
          $region48: #{basic_block_forward.3} parent=43 // pred_fallthru
            _
          %342 = vnop
        $region44: #{basic_block_forward.3} parent=39 // pred_fallthru
          _
        // Predicated region
        $region79: #{basic_block_forward.3} parent=39 // pred_check
          %p343 = pneg %p198
        $region80: #{basic_block_forward.3} parent=39 // pred_check_branch
          %345 = sbr.rel (%p343) target = $region82
        $region81: #{basic_block_forward.3} parent=39 // pred_region
          %s346 = smul.u32 2, %s22
          %p347 = scmp.lt.s32.totalorder %s346, 3
          %s348 = scalar_select %p347, %s346, 3
          %s349 = smul.addr %s348, 4
          %s350 = scalar_lea.vmem %s7, %s349
          %s351 = smul.u32 2, %s22
        $region82: #{basic_block_forward.3} parent=39 // pred_fallthru
          _
      $region40: #{basic_block_forward.3} parent=5 // pred_fallthru
        _
      %p352 = scmp.le.s32.totalorder 1, %s14
      %p353 = scmp.lt.s32.totalorder %s14, 5
      %p354 = pnand %p352, %p353
      %p355 = pneg %p354
      // Predicated region
      $region83: #{basic_block_forward.3} parent=5 // pred_check
        _
      $region84: #{basic_block_forward.3} parent=5 // pred_check_branch
        %357 = sbr.rel (%p354) target = $region86
      $region85: #{basic_block_forward.3} parent=5 // pred_region
        %s358 = ssub.s32 %s14, 1
        %s359 = sand.u32 %s165, 1
        %s360 = sand.u32 %s165, 1
        %s361 = smul.addr %s360, 72
        %s362 = scalar_lea.vmem [#allocation6], %s361
        // Predicated region
        $region87: #{basic_block_forward.3} parent=85 // pred_check
          %p363 = pneg %p178
        $region88: #{basic_block_forward.3} parent=85 // pred_check_branch
          %365 = sbr.rel (%p363) target = $region90
        $region89: #{basic_block_forward.3} parent=85 // pred_region
          _
        $region90: #{basic_block_forward.3} parent=85 // pred_fallthru
          _
        %p366 = pneg %p47
        %p367 = pneg %p44
        %p368 = pneg %p68
        %p369 = pneg %p65
        %p370 = pneg %p89
        %p371 = pneg %p86
        %p372 = pneg %p110
        %p373 = pneg %p107
        %p374 = pneg %p131
        %p375 = pneg %p128
        %p376 = pneg %p152
        %p377 = pneg %p149
        %s378 = sand.u32 %s165, 1
        %s379 = sand.u32 %s165, 1
        %s380 = smul.addr %s379, 72
        %s381 = scalar_lea.vmem [#allocation6], %s380
        %p382 = pneg %p178
        %p383 = pneg %p175
        %s384 = smul.u32 2, %s24
        %p385 = scmp.lt.s32.totalorder %s384, 3
        %s386 = scalar_select %p385, %s384, 3
        %s387 = smul.addr %s386, 4
        %s388 = scalar_lea.vmem %s7, %s387
        %p389 = pneg %p204
        %p390 = pneg %p201
        %p391 = pneg %p232
        %p392 = pneg %p229
        %s393 = smul.u32 %s24, %s23
        %s394 = smul.u32 2, %s393
        %p395 = scmp.lt.s32.totalorder %s394, 3
        %s396 = scalar_select %p395, %s394, 3
        %s397 = smul.addr %s396, 8
        %s398 = scalar_lea.vmem %s8, %s397
        %s399 = smul.u32 2, %s24
        %s400 = smul.u32 2, %s24
        %p401 = scmp.lt.s32.totalorder %s400, 3
        %s402 = scalar_select %p401, %s400, 3
        %s403 = smul.addr %s402, 4
        %s404 = scalar_lea.vmem %s7, %s403
        %s405 = smul.u32 2, %s24
        %s406 = smul.u32 %s24, %s23
        %s407 = smul.u32 2, %s406
        %p408 = scmp.lt.s32.totalorder %s407, 3
        %s409 = scalar_select %p408, %s407, 3
        %s410 = smul.addr %s409, 8
        %s411 = scalar_lea.vmem %s8, %s410
        %s412 = smul.u32 %s24, %s23
        %s413 = smul.u32 2, %s412
        %v415 = vld [vmem:[%s0] sm:$0xf]
        %v416 = vld [vmem:[%s362] sm:$0xff]
        %v417 = vld [vmem:[%s362 + $0x8] sm:$0xff]
        %v418 = vld [vmem:[%s362 + $0x10] sm:$0xff]
        %v419 = vld [vmem:[%s362 + $0x18] sm:$0xff]
        %v420 = vld [vmem:[%s362 + $0x20] sm:$0xff]
        %v421 = vld [vmem:[%s362 + $0x28] sm:$0xff]
        %v422 = vld [vmem:[%s362 + $0x30] sm:$0xff]
        %v423 = vld [vmem:[%s362 + $0x38] sm:$0xff]
        %v424 = vld [vmem:[%s362 + $0x40] sm:$0xff]
        %v434 = vunpack.c.l.b16 %v416
        %v435 = vunpack.c.h.b16 %v416
        %v436 = vunpack.c.l.b16 %v417
        %v437 = vunpack.c.h.b16 %v417
        %v438 = vunpack.c.l.b16 %v418
        %v439 = vunpack.c.h.b16 %v418
        %v440 = vunpack.c.l.b16 %v419
        %v441 = vunpack.c.h.b16 %v419
        %v442 = vunpack.c.l.b16 %v420
        %v443 = vunpack.c.h.b16 %v420
        %v444 = vunpack.c.l.b16 %v421
        %v445 = vunpack.c.h.b16 %v421
        %v446 = vunpack.c.l.b16 %v422
        %v447 = vunpack.c.h.b16 %v422
        %v448 = vunpack.c.l.b16 %v423
        %v449 = vunpack.c.h.b16 %v423
        %v450 = vunpack.c.l.b16 %v424
        %v451 = vunpack.c.h.b16 %v424
        %v452 = vpack.c.b16 %v436, %v434
        %v453 = vpack.c.b16 %v437, %v435
        %v454 = vpack.c.b16 %v440, %v438
        %v455 = vpack.c.b16 %v441, %v439
        %v456 = vpack.c.b16 %v444, %v442
        %v457 = vpack.c.b16 %v445, %v443
        %v458 = vpack.c.b16 %v448, %v446
        %v459 = vpack.c.b16 %v449, %v447
        %v460 = vpack.c.b16 %v450, %v450
        %v461 = vpack.c.b16 %v451, %v451
        %vm470 = vcmask 588800
        %v472 = vsel %vm470, %v415, 0
        %vm474 = vcmask 1043456
        %v476 = vsel %vm474, %v460, 0
        %v479 = vsel %vm474, %v461, 0
        %481 = vmatprep.subr.bf16.mxu0 %v453
        %482 = vmatpush1.bf16.msra.mxu0 %v452
        %483 = vmatprep.subr.bf16.mxu0 %v455
        %484 = vmatpush1.bf16.msra.mxu0 %v454
        %485 = vmatprep.subr.bf16.mxu0 %v457
        %486 = vmatpush1.bf16.msra.mxu0 %v456
        %487 = vmatprep.subr.bf16.mxu0 %v459
        %488 = vmatpush1.bf16.msra.mxu0 %v458
        %489 = vmatprep.subr.bf16.mxu0 %v479
        %490 = vmatpush1.bf16.msra.mxu0 %v476
        %491 = vmatprep.subr.bf16.mxu0 0
        %492 = vmatpush1.bf16.msra.mxu0 0
        %493 = vmatprep.subr.bf16.mxu0 0
        %494 = vmatpush1.bf16.msra.mxu0 0
        %495 = vmatprep.subr.bf16.mxu0 0
        %496 = vmatpush1.bf16.msra.mxu0 0
        %497 = vmatprep.subr.bf16.mxu0 0
        %498 = vmatpush1.bf16.msra.mxu0 0
        %499 = vmatprep.subr.bf16.mxu0 0
        %500 = vmatpush1.bf16.msra.mxu0 0
        %501 = vmatprep.subr.bf16.mxu0 0
        %502 = vmatpush1.bf16.msra.mxu0 0
        %503 = vmatprep.subr.bf16.mxu0 0
        %504 = vmatpush1.bf16.msra.mxu0 0
        %505 = vmatprep.subr.bf16.mxu0 0
        %506 = vmatpush1.bf16.msra.mxu0 0
        %507 = vmatprep.subr.bf16.mxu0 0
        %508 = vmatpush1.bf16.msra.mxu0 0
        %509 = vmatprep.subr.bf16.mxu0 0
        %510 = vmatpush1.bf16.msra.mxu0 0
        %511 = vmatprep.subr.bf16.mxu0 0
        %512 = vmatpush1.bf16.msra.mxu0 0
        %513 = vmatprep.mubr.bf16.mxu0 0
        %514 = vmatmul.mubr.bf16.gmra.mrb[0].mxu0 %v472
        %v515 = vpop.f32.mrb[0].mxu0
        %v516 = vadd.f32 0.0, %v515
        %v517 = vpop.f32.mrb[0].mxu0
        %v518 = vadd.f32 0.0, %v517
        %v519 = vpop.f32.mrb[0].mxu0
        %v520 = vpop.f32.mrb[0].mxu0
        %521 = vdwg.mxu0
        %v522 = vld [vmem:[%s3] sm:$0xf]
        %v523 = vld [vmem:[%s404] sm:$0xff]
        %v525 = vunpack.c.l.b16 %v523
        %v526 = vunpack.c.h.b16 %v523
        %v527 = vpack.c.b16 %v525, %v525
        %v528 = vpack.c.b16 %v526, %v526
        %vm529 = vcmask 64512
        %v531 = vsel %vm529, %v522, 0
        %v534 = vsel %vm474, %v527, 0
        %v537 = vsel %vm474, %v528, 0
        %539 = vmatprep.subr.bf16.mxu0 %v537
        %540 = vmatpush1.bf16.msra.mxu0 %v534
        %541 = vmatprep.subr.bf16.mxu0 0
        %542 = vmatpush1.bf16.msra.mxu0 0
        %543 = vmatprep.subr.bf16.mxu0 0
        %544 = vmatpush1.bf16.msra.mxu0 0
        %545 = vmatprep.subr.bf16.mxu0 0
        %546 = vmatpush1.bf16.msra.mxu0 0
        %547 = vmatprep.subr.bf16.mxu0 0
        %548 = vmatpush1.bf16.msra.mxu0 0
        %549 = vmatprep.subr.bf16.mxu0 0
        %550 = vmatpush1.bf16.msra.mxu0 0
        %551 = vmatprep.subr.bf16.mxu0 0
        %552 = vmatpush1.bf16.msra.mxu0 0
        %553 = vmatprep.subr.bf16.mxu0 0
        %554 = vmatpush1.bf16.msra.mxu0 0
        %555 = vmatprep.subr.bf16.mxu0 0
        %556 = vmatpush1.bf16.msra.mxu0 0
        %557 = vmatprep.subr.bf16.mxu0 0
        %558 = vmatpush1.bf16.msra.mxu0 0
        %559 = vmatprep.subr.bf16.mxu0 0
        %560 = vmatpush1.bf16.msra.mxu0 0
        %561 = vmatprep.subr.bf16.mxu0 0
        %562 = vmatpush1.bf16.msra.mxu0 0
        %563 = vmatprep.subr.bf16.mxu0 0
        %564 = vmatpush1.bf16.msra.mxu0 0
        %565 = vmatprep.subr.bf16.mxu0 0
        %566 = vmatpush1.bf16.msra.mxu0 0
        %567 = vmatprep.subr.bf16.mxu0 0
        %568 = vmatpush1.bf16.msra.mxu0 0
        %569 = vmatprep.subr.bf16.mxu0 0
        %570 = vmatpush1.bf16.msra.mxu0 0
        %571 = vmatprep.mubr.bf16.mxu0 0
        %572 = vmatmul.mubr.bf16.gmra.mrb[0].mxu0 %v531
        %v573 = vpop.f32.mrb[0].mxu0
        %v574 = vadd.f32 0.0, %v573
        %v575 = vpop.f32.mrb[0].mxu0
        %v576 = vadd.f32 0.0, %v575
        %v577 = vpop.f32.mrb[0].mxu0
        %v578 = vpop.f32.mrb[0].mxu0
        %579 = vdwg.mxu0
        %p580 = scmp.eq.s32.totalorder %s23, 0
        %p581 = scmp.eq.s32.totalorder %s24, 0
        %p582 = pnand %p580, %p581
        %p583 = pneg %p582
        // Predicated region
        $region91: #{basic_block_forward.3} parent=85 // pred_check
          _
        $region92: #{basic_block_forward.3} parent=85 // pred_check_branch
          %585 = sbr.rel (%p582) target = $region94
        $region93: #{basic_block_forward.3} parent=85 // pred_region
          %vm586 = vcmask 7168
          %587 = vst.msk [vmem:[#allocation2] sm:$0xff] %vm586, 0.0
          %588 = vst.msk [vmem:[#allocation3] sm:$0xff] %vm586, 0.0
          %589 = vst.msk [vmem:[#allocation4] sm:$0xff] %vm586, 0.0
          %590 = vst.msk [vmem:[#allocation5] sm:$0xff] %vm586, 0.0
        $region94: #{basic_block_forward.3} parent=85 // pred_fallthru
          _
        // Predicated region
        $region95: #{basic_block_forward.3} parent=85 // pred_check
          %p591 = pneg %p580
        $region96: #{basic_block_forward.3} parent=85 // pred_check_branch
          %593 = sbr.rel (%p591) target = $region98
        $region97: #{basic_block_forward.3} parent=85 // pred_region
          %v594 = vld [vmem:[#allocation2] sm:$0xff]
          %v595 = vadd.f32 %v516, %v518
          %596 = vadd.xlane.f32.xlu0 %v595
          %v597 = vpop.xlane.xlu0 %596
          %v598 = vadd.f32 %v594, %v597
          %vm599 = vcmask 7168
          %600 = vst.msk [vmem:[#allocation2] sm:$0xff] %vm599, %v598
          %v601 = vld [vmem:[#allocation3] sm:$0xff]
          %v602 = vmul.f32 %v516, %v516
          %v603 = vmul.f32 %v518, %v518
          %v604 = vadd.f32 %v602, %v603
          %605 = vadd.xlane.f32.xlu0 %v604
          %v606 = vpop.xlane.xlu0 %605
          %v607 = vadd.f32 %v601, %v606
          %608 = vst.msk [vmem:[#allocation3] sm:$0xff] %vm599, %v607
          %v609 = vld [vmem:[#allocation4] sm:$0xff]
          %v610 = vadd.f32 %v574, %v576
          %611 = vadd.xlane.f32.xlu0 %v610
          %v612 = vpop.xlane.xlu0 %611
          %v613 = vadd.f32 %v609, %v612
          %614 = vst.msk [vmem:[#allocation4] sm:$0xff] %vm599, %v613
          %v615 = vld [vmem:[#allocation5] sm:$0xff]
          %v616 = vmul.f32 %v574, %v574
          %v617 = vmul.f32 %v576, %v576
          %v618 = vadd.f32 %v616, %v617
          %619 = vadd.xlane.f32.xlu0 %v618
          %v620 = vpop.xlane.xlu0 %619
          %v621 = vadd.f32 %v615, %v620
          %622 = vst.msk [vmem:[#allocation5] sm:$0xff] %vm599, %v621
        $region98: #{basic_block_forward.3} parent=85 // pred_fallthru
          _
        %p623 = scmp.eq.s32.totalorder %s23, 1
        // Predicated region
        $region99: #{basic_block_forward.3} parent=85 // pred_check
          %p624 = pneg %p623
        $region100: #{basic_block_forward.3} parent=85 // pred_check_branch
          %626 = sbr.rel (%p624) target = $region102
        $region101: #{basic_block_forward.3} parent=85 // pred_region
          %v627 = vld [vmem:[#allocation2] sm:$0xff]
          %v628 = vmul.f32 %v627, 0.001953125
          %v629 = vld [vmem:[#allocation3] sm:$0xff]
          %v630 = vmul.f32 %v629, 0.001953125
          %v631 = vmul.f32 %v628, %v628
          %v632 = vsub.f32 %v630, %v631
          %634 = vset.pattern.permute.xlu0 0
          %635 = vperm.xlu0 %634, %v628
          %v636 = vpop.permute.xlu0 %635
          %v638 = vsub.f32 %v516, %v636
          %v639 = vsub.f32 %v518, %v636
          %v640 = vadd.f32 %v632, 1e-05
          %v641 = vrsqrt.pop %v640
          %643 = vset.pattern.permute.xlu0 0
          %644 = vperm.xlu0 %643, %v641
          %v645 = vpop.permute.xlu0 %644
          %v647 = vmul.f32 %v638, %v645
          %v648 = vmul.f32 %v639, %v645
          %v649 = vld [vmem:[%s1] sm:$0xff]
          %651 = vset.pattern.permute.xlu0 0
          %652 = vperm.xlu0 %651, %v649
          %v653 = vpop.permute.xlu0 %652
          %v655 = vmul.f32 %v647, %v653
          %v656 = vmul.f32 %v648, %v653
          %v657 = vld [vmem:[%s2] sm:$0xff]
          %659 = vset.pattern.permute.xlu0 0
          %660 = vperm.xlu0 %659, %v657
          %v661 = vpop.permute.xlu0 %660
          %v663 = vadd.f32 %v655, %v661
          %v664 = vadd.f32 %v656, %v661
          %v665 = vld [vmem:[#allocation4] sm:$0xff]
          %v666 = vmul.f32 %v665, 0.001953125
          %v667 = vld [vmem:[#allocation5] sm:$0xff]
          %v668 = vmul.f32 %v667, 0.001953125
          %v669 = vmul.f32 %v666, %v666
          %v670 = vsub.f32 %v668, %v669
          %672 = vset.pattern.permute.xlu0 0
          %673 = vperm.xlu0 %672, %v666
          %v674 = vpop.permute.xlu0 %673
          %v676 = vsub.f32 %v574, %v674
          %v677 = vsub.f32 %v576, %v674
          %v678 = vadd.f32 %v670, 1e-05
          %v679 = vrsqrt.pop %v678
          %681 = vset.pattern.permute.xlu0 0
          %682 = vperm.xlu0 %681, %v679
          %v683 = vpop.permute.xlu0 %682
          %v685 = vmul.f32 %v676, %v683
          %v686 = vmul.f32 %v677, %v683
          %v687 = vld [vmem:[%s4] sm:$0xff]
          %689 = vset.pattern.permute.xlu0 0
          %690 = vperm.xlu0 %689, %v687
          %v691 = vpop.permute.xlu0 %690
          %v693 = vmul.f32 %v685, %v691
          %v694 = vmul.f32 %v686, %v691
          %v695 = vld [vmem:[%s5] sm:$0xff]
          %697 = vset.pattern.permute.xlu0 0
          %698 = vperm.xlu0 %697, %v695
          %v699 = vpop.permute.xlu0 %698
          %v701 = vadd.f32 %v693, %v699
          %v702 = vadd.f32 %v694, %v699
          %v703 = vadd.f32 %v663, %v701
          %v704 = vadd.f32 %v664, %v702
          %v705 = vmax.f32 %v703, 0.0
          %v706 = vmax.f32 %v704, 0.0
          %707 = vst [vmem:[%s411] sm:$0xff] %v705
          %708 = vst [vmem:[%s411 + $0x8] sm:$0xff] %v706
        $region102: #{basic_block_forward.3} parent=85 // pred_fallthru
          _
        %s709 = smul.u32 %s24, %s23
        %s710 = smul.u32 2, %s709
        %p711 = scmp.lt.s32.totalorder %s710, 3
        %s712 = scalar_select %p711, %s710, 3
        %s713 = smul.addr %s712, 8
        %s714 = scalar_lea.vmem %s8, %s713
        // Predicated region
        $region103: #{basic_block_forward.3} parent=85 // pred_check
          %p715 = pneg %p229
        $region104: #{basic_block_forward.3} parent=85 // pred_check_branch
          %717 = sbr.rel (%p715) target = $region106
        $region105: #{basic_block_forward.3} parent=85 // pred_region
          %s718 = smul.u32 %s24, %s23
          %s719 = smul.u32 2, %s718
        $region106: #{basic_block_forward.3} parent=85 // pred_fallthru
          _
      $region86: #{basic_block_forward.3} parent=5 // pred_fallthru
        _
      %p720 = scmp.le.s32.totalorder 2, %s14
      // Predicated region
      $region107: #{basic_block_forward.3} parent=5 // pred_check
        %p721 = pneg %p720
      $region108: #{basic_block_forward.3} parent=5 // pred_check_branch
        %723 = sbr.rel (%p721) target = $region110
      $region109: #{basic_block_forward.3} parent=5 // pred_region
        %s724 = ssub.s32 %s14, 2
        // Predicated region
        $region111: #{basic_block_forward.3} parent=109 // pred_check
          %p725 = pneg %p235
        $region112: #{basic_block_forward.3} parent=109 // pred_check_branch
          %727 = sbr.rel (%p725) target = $region114
        $region113: #{basic_block_forward.3} parent=109 // pred_region
          %s728 = smul.u32 %s26, %s25
          %s729 = smul.u32 2, %s728
          %p730 = scmp.lt.s32.totalorder %s729, 3
          %s731 = scalar_select %p730, %s729, 3
          %s732 = smul.addr %s731, 8
          %s733 = scalar_lea.vmem %s8, %s732
        $region114: #{basic_block_forward.3} parent=109 // pred_fallthru
          _
      $region110: #{basic_block_forward.3} parent=5 // pred_fallthru
        _
    $region6: #{basic_block_forward.3} parent=1 // loop_footer
      %s18 = sadd.s32 1, %s14
    $region7: #{basic_block_forward.3} parent=1 // loop_footer_branch
      %13 = sbr.rel target = $region3
    $region8: #{basic_block_forward.3} parent=1 // loop_exit
      _

</llo_original>
